<compile_context>
chip_gen: v7x
topology: tpu7x:2x2x1
jax: 0.10.0
libtpu: 0.0.40
codegen_flags: <defaults>
</compile_context>

<pallas_src>
import functools
from typing import NamedTuple

import jax
import jax.numpy as jnp
from jax.experimental import pallas as pl
from jax.experimental.pallas import tpu as pltpu

NEG_SLOPE = 0.2  # LeakyReLU(0.2)

# (cin, cout, stride, padding) exactly as produced by the reference __init__
# with wgan_loss=True (kernel_size == True == 1 for conv1..4, explicit k=1 for conv5).
_LAYER_CFG = (
    (3, 64, 2, 1),
    (64, 128, 2, 1),
    (128, 256, 2, 1),
    (256, 512, 2, 1),
    (512, 1, 1, 1),
)


class _AxisPlan(NamedTuple):
    """Static per-axis schedule of which pixels each layer actually has to produce."""
    sizes: tuple    # full conv output size per layer (PyTorch semantics)
    cnt: tuple      # number of needed output pixels per layer (arithmetic sub-grid)
    alo: tuple      # first needed position whose single (k=1) input read is in bounds
    ahi: tuple      # last such position
    in_start: int   # raw-input gather for conv1: first pixel, stride, count
    in_stride: int
    in_cnt: int


def _axis_plan(in_len):
    n = len(_LAYER_CFG)
    sizes = []
    length = in_len
    for _, _, s, p in _LAYER_CFG:
        length = (length + 2 * p - 1) // s + 1
        sizes.append(length)

    off = [0] * n
    step = [0] * n
    cnt = [0] * n
    alo = [0] * n
    ahi = [0] * n
    off[-1], step[-1], cnt[-1] = 0, 1, sizes[-1]      # every pixel of the net output is needed
    in_start = in_stride = in_cnt = 0
    for i in range(n - 1, -1, -1):
        _, _, s, p = _LAYER_CFG[i]
        prev_len = sizes[i - 1] if i > 0 else in_len
        q0 = s * off[i] - p          # input pixel read by needed output #0 (k=1 conv)
        qs = s * step[i]             # spacing between consecutive reads
        a_lo = max(0, -(q0 // qs))   # ceil(-q0/qs): first in-bounds needed position
        a_hi = min(cnt[i] - 1, (prev_len - 1 - q0) // qs)
        if a_hi < a_lo:
            raise ValueError("spatial input too small for DiscrimiterNet")
        alo[i], ahi[i] = a_lo, a_hi
        if i > 0:
            off[i - 1] = q0 + qs * a_lo
            step[i - 1] = qs
            cnt[i - 1] = a_hi - a_lo + 1
        else:
            in_start, in_stride, in_cnt = q0 + qs * a_lo, qs, a_hi - a_lo + 1
    return _AxisPlan(tuple(sizes), tuple(cnt), tuple(alo), tuple(ahi),
                     in_start, in_stride, in_cnt)


def _fused_kernel(a2_ref, w2_ref, b2_ref, w3_ref, b3_ref, w4_ref, b4_ref,
                  w5_ref, b5_ref, out_ref, g3_ref, g4_ref, g5_ref, *, plans):
    """conv2..conv5 (+ bias + LeakyReLU) for ONE image; activations resident in VMEM.

    g{3,4,5}_ref hold the zero-bordered gathered inputs of conv3/4/5 (f32 scratch).
    plans[i] = (src_rows, src_cols, dst_rows, dst_cols, top, left): static placement of
    layer (i+2)'s output into layer (i+3)'s gathered input.
    """

    def conv_lrelu(a_bf16, w_ref, b_ref):
        z = jnp.dot(a_bf16, w_ref[...], preferred_element_type=jnp.float32)  # MXU, f32 acc
        z = z + b_ref[...]                                                   # bias in f32
        return jnp.maximum(z, NEG_SLOPE * z)                                 # LeakyReLU(0.2)

    def place(y, dst_ref, plan):
        # Write y (row-major flattened src spatial grid) into dst at (top, left);
        # everything outside the placed rectangle is the conv's zero padding.
        sr, sc, dr, dc, top, left = plan
        if (sr, sc, top, left) == (dr, dc, 0, 0):      # exact fit: single store
            dst_ref[...] = y
            return
        dst_ref[...] = jnp.zeros_like(dst_ref)
        if sc == dc and left == 0:                     # full-width rows: one slab
            dst_ref[top * dc:(top + sr) * dc, :] = y
            return
        for r in range(sr):                            # static unroll (a handful of rows)
            d0 = (r + top) * dc + left
            dst_ref[d0:d0 + sc, :] = y[r * sc:(r + 1) * sc, :]

    y = conv_lrelu(a2_ref[...], w2_ref, b2_ref)                        # conv2
    place(y, g3_ref, plans[0])
    y = conv_lrelu(g3_ref[...].astype(jnp.bfloat16), w3_ref, b3_ref)   # conv3
    place(y, g4_ref, plans[1])
    y = conv_lrelu(g4_ref[...].astype(jnp.bfloat16), w4_ref, b4_ref)   # conv4
    place(y, g5_ref, plans[2])
    y = conv_lrelu(g5_ref[...].astype(jnp.bfloat16), w5_ref, b5_ref)   # conv5 (padded to 128 ch)
    out_ref[...] = y.astype(out_ref.dtype)                             # lane-dense bf16 store


def _fused_conv_chain(a2, layer_params, hp, wp):
    """One pallas_call running conv2..conv5 for the whole batch (grid over images)."""
    n, m2, c2 = a2.shape

    ws, bs = [], []
    for w, b in layer_params:
        cout = w.shape[1]
        if cout < 128:
            # conv5: pad the single output channel to 128 lanes -> lane-dense stores;
            # zero padding keeps the extra lanes at LeakyReLU(0) == 0.
            w = jnp.pad(w, ((0, 0), (0, 128 - cout)))
            b = jnp.pad(b, ((0, 128 - cout),))
        ws.append(w.astype(jnp.bfloat16))
        bs.append(b.astype(jnp.float32).reshape(1, -1))

    m_out = hp.cnt[4] * wp.cnt[4]
    plans = tuple(
        (hp.cnt[i + 1], wp.cnt[i + 1],      # extent of layer (i+2)'s computed output
         hp.cnt[i + 2], wp.cnt[i + 2],      # extent of layer (i+3)'s gathered input
         hp.alo[i + 2], wp.alo[i + 2])      # placement offset (zero border elsewhere)
        for i in range(3))

    in_specs = [pl.BlockSpec((None, m2, c2), lambda i: (i, 0, 0))]      # per-image pixel tile
    args = [a2]
    for wt, bias in zip(ws, bs):
        in_specs.append(pl.BlockSpec(wt.shape, lambda i: (0, 0)))       # resident weight
        in_specs.append(pl.BlockSpec(bias.shape, lambda i: (0, 0)))     # resident bias
        args += [wt, bias]

    scratch_shapes = [
        pltpu.VMEM((hp.cnt[2] * wp.cnt[2], 128), jnp.float32),   # gathered input of conv3
        pltpu.VMEM((hp.cnt[3] * wp.cnt[3], 256), jnp.float32),   # gathered input of conv4
        pltpu.VMEM((hp.cnt[4] * wp.cnt[4], 512), jnp.float32),   # gathered input of conv5
    ]

    return pl.pallas_call(
        functools.partial(_fused_kernel, plans=plans),
        out_shape=jax.ShapeDtypeStruct((n, m_out, 128), jnp.bfloat16),
        grid=(n,),
        in_specs=in_specs,
        out_specs=pl.BlockSpec((None, m_out, 128), lambda i: (i, 0, 0)),
        scratch_shapes=scratch_shapes,
        compiler_params=pltpu.CompilerParams(
            dimension_semantics=("parallel",),     # v7x: both TensorCores take images
        ),
    )(*args)


def init_params(key):
    """Deterministic init (PyTorch Conv2d default: U(-1/sqrt(fan_in), +1/sqrt(fan_in)))."""
    params = []
    for i, (cin, cout, _, _) in enumerate(_LAYER_CFG):
        kw, kb = jax.random.split(jax.random.fold_in(key, i))
        bound = 1.0 / (cin ** 0.5)                 # fan_in = cin * 1 * 1
        w = jax.random.uniform(kw, (cin, cout), jnp.float32, -bound, bound)
        b = jax.random.uniform(kb, (cout,), jnp.float32, -bound, bound)
        params.append((w, b))
    return params


def discrimiter_net_forward(x_nchw, params):
    n, cin, h, w = x_nchw.shape
    assert cin == _LAYER_CFG[0][0]
    hp, wp = _axis_plan(h), _axis_plan(w)

    # ---- conv1 (3 -> 64) in plain XLA, on the tiny pixel sub-grid the rest of the net
    # actually reads (a 3-channel input is lane-hostile inside a TPU kernel).
    w1, b1 = params[0]
    xs = x_nchw[:, :,
                hp.in_start: hp.in_start + hp.in_stride * (hp.in_cnt - 1) + 1: hp.in_stride,
                wp.in_start: wp.in_start + wp.in_stride * (wp.in_cnt - 1) + 1: wp.in_stride]
    xs = jnp.transpose(xs, (0, 2, 3, 1)).astype(jnp.float32)      # (n, in_cnt_h, in_cnt_w, 3)
    a1 = jnp.pad(xs, ((0, 0),
                      (hp.alo[0], hp.cnt[0] - 1 - hp.ahi[0]),
                      (wp.alo[0], wp.cnt[0] - 1 - wp.ahi[0]),
                      (0, 0)))                                    # zeros = conv padding
    z1 = jnp.einsum("nhwc,cd->nhwd", a1, w1) + b1
    y1 = jnp.maximum(z1, NEG_SLOPE * z1)                          # (n, cnt0_h, cnt0_w, 64)

    # ---- gathered input of conv2 (zero border), flattened spatially, bf16 for the MXU.
    a2 = jnp.pad(y1, ((0, 0),
                      (hp.alo[1], hp.cnt[1] - 1 - hp.ahi[1]),
                      (wp.alo[1], wp.cnt[1] - 1 - wp.ahi[1]),
                      (0, 0)))
    a2 = a2.astype(jnp.bfloat16).reshape(n, hp.cnt[1] * wp.cnt[1], 64)

    # ---- conv2..conv5 fused in one Pallas kernel (activations stay in VMEM).
    out = _fused_conv_chain(a2, params[1:], hp, wp)               # (n, h5*w5, 128) bf16

    out = out.reshape(n, hp.cnt[4], wp.cnt[4], 128)[..., :1]      # slice the real channel
    return jnp.transpose(out, (0, 3, 1, 2)).astype(jnp.float32)   # NCHW f32


def _reference_forward(x_nchw, params):
    """Pure-JAX f32 replica of the PyTorch forward (k=1 convs), for validation only."""
    x = x_nchw.astype(jnp.float32)
    for (w, b), (_, _, s, p) in zip(params, _LAYER_CFG):
        xp = jnp.pad(x, ((0, 0), (0, 0), (p, p), (p, p)))
        xs = xp[:, :, ::s, ::s]                       # a k=1 conv is just strided sampling
        y = jnp.einsum("nchw,cd->ndhw", xs, w) + b[None, :, None, None]
        x = jnp.maximum(y, NEG_SLOPE * y)
    return x


if __name__ == "__main__":
    key = jax.random.PRNGKey(0)
    kx, kp = jax.random.split(key)
    x = jax.random.normal(kx, (2, 3, 16, 16), jnp.float32)    # NCHW, 3 channels for conv1
    params = init_params(kp)

    fwd = jax.jit(functools.partial(discrimiter_net_forward, params=params))
    out = fwd(x)
    jax.block_until_ready(out)

    # spatial: 16 -> 9 -> 6 -> 4 -> 3 -> 5 (k=1, s=1, p=1); channels 3 -> ... -> 1
    assert out.shape == (2, 1, 5, 5), out.shape
    assert out.dtype == jnp.float32

    # bf16 activations/weights vs. f32 reference -> compare at bf16 tolerance.
    ref = _reference_forward(x, params)
    max_err = float(jnp.max(jnp.abs(out - ref)))
    assert jnp.allclose(out, ref, rtol=5e-2, atol=5e-2), f"max abs err {max_err}"
    print("KERNEL_OK")
</pallas_src>

<mosaic_0001>
module attributes {stable_mosaic.version = 11 : i64} {
  func.func @_fused_kernel(%arg0: i32, %arg1: memref<1x4x64xbf16, #tpu.memory_space<vmem>>, %arg2: memref<64x128xbf16, #tpu.memory_space<vmem>>, %arg3: memref<1x128xf32, #tpu.memory_space<vmem>>, %arg4: memref<128x256xbf16, #tpu.memory_space<vmem>>, %arg5: memref<1x256xf32, #tpu.memory_space<vmem>>, %arg6: memref<256x512xbf16, #tpu.memory_space<vmem>>, %arg7: memref<1x512xf32, #tpu.memory_space<vmem>>, %arg8: memref<512x128xbf16, #tpu.memory_space<vmem>>, %arg9: memref<1x128xf32, #tpu.memory_space<vmem>>, %arg10: memref<1x25x128xbf16, #tpu.memory_space<vmem>>, %arg11: memref<4x128xf32, #tpu.memory_space<vmem>>, %arg12: memref<9x256xf32, #tpu.memory_space<vmem>>, %arg13: memref<25x512xf32, #tpu.memory_space<vmem>>) attributes {dimension_semantics = [#tpu.dimension_semantics<parallel>], iteration_bounds = array<i64: 2>, scalar_prefetch = 0 : i64, scratch_operands = 3 : i64, tpu.core_type = #tpu.core_type<tc>, window_params = [{transform_indices = @transform_0, window_bounds = array<i64: 1, 4, 64>}, {pipeline_mode = #tpu.pipeline_mode<synchronous>, transform_indices = @transform_1, window_bounds = array<i64: 64, 128>}, {pipeline_mode = #tpu.pipeline_mode<synchronous>, transform_indices = @transform_2, window_bounds = array<i64: 1, 128>}, {pipeline_mode = #tpu.pipeline_mode<synchronous>, transform_indices = @transform_3, window_bounds = array<i64: 128, 256>}, {pipeline_mode = #tpu.pipeline_mode<synchronous>, transform_indices = @transform_4, window_bounds = array<i64: 1, 256>}, {pipeline_mode = #tpu.pipeline_mode<synchronous>, transform_indices = @transform_5, window_bounds = array<i64: 256, 512>}, {pipeline_mode = #tpu.pipeline_mode<synchronous>, transform_indices = @transform_6, window_bounds = array<i64: 1, 512>}, {pipeline_mode = #tpu.pipeline_mode<synchronous>, transform_indices = @transform_7, window_bounds = array<i64: 512, 128>}, {pipeline_mode = #tpu.pipeline_mode<synchronous>, transform_indices = @transform_8, window_bounds = array<i64: 1, 128>}, {transform_indices = @transform_9, window_bounds = array<i64: 1, 25, 128>}]} {
    %c0 = arith.constant 0 : index
    %c0_0 = arith.constant 0 : index
    %c0_1 = arith.constant 0 : index
    %0 = vector.load %arg1[%c0, %c0_0, %c0_1] : memref<1x4x64xbf16, #tpu.memory_space<vmem>>, vector<1x4x64xbf16>
    %1 = vector.shape_cast %0 : vector<1x4x64xbf16> to vector<4x64xbf16>
    %c0_2 = arith.constant 0 : index
    %c0_3 = arith.constant 0 : index
    %2 = vector.load %arg2[%c0_2, %c0_3] : memref<64x128xbf16, #tpu.memory_space<vmem>>, vector<64x128xbf16>
    %cst = arith.constant dense<0.000000e+00> : vector<4x128xf32>
    %3 = tpu.matmul %1, %2, %cst {dimension_numbers = #tpu.dot_dimension_numbers<[1], [0], [0], [1], [0, 0, 1, 1], [], []>} : vector<4x64xbf16>, vector<64x128xbf16>, vector<4x128xf32> -> vector<4x128xf32>
    %c0_4 = arith.constant 0 : index
    %c0_5 = arith.constant 0 : index
    %4 = vector.load %arg3[%c0_4, %c0_5] : memref<1x128xf32, #tpu.memory_space<vmem>>, vector<1x128xf32>
    %5 = vector.broadcast %4 : vector<1x128xf32> to vector<4x128xf32>
    %6 = arith.addf %3, %5 : vector<4x128xf32>
    %cst_6 = arith.constant 2.000000e-01 : f32
    %7 = vector.broadcast %cst_6 : f32 to vector<4x128xf32>
    %8 = arith.mulf %7, %6 : vector<4x128xf32>
    %9 = arith.maximumf %6, %8 : vector<4x128xf32>
    %c0_7 = arith.constant 0 : index
    %c0_8 = arith.constant 0 : index
    %10 = vector.load %arg11[%c0_7, %c0_8] : memref<4x128xf32, #tpu.memory_space<vmem>>, vector<4x128xf32>
    tpu.vector_store %arg11[%c0_7, %c0_8], %9 {strides = array<i32>} : memref<4x128xf32, #tpu.memory_space<vmem>>, vector<4x128xf32>,
    %c0_9 = arith.constant 0 : index
    %c0_10 = arith.constant 0 : index
    %11 = vector.load %arg11[%c0_9, %c0_10] : memref<4x128xf32, #tpu.memory_space<vmem>>, vector<4x128xf32>
    %12 = arith.truncf %11 : vector<4x128xf32> to vector<4x128xbf16>
    %c0_11 = arith.constant 0 : index
    %c0_12 = arith.constant 0 : index
    %13 = vector.load %arg4[%c0_11, %c0_12] : memref<128x256xbf16, #tpu.memory_space<vmem>>, vector<128x256xbf16>
    %cst_13 = arith.constant dense<0.000000e+00> : vector<4x256xf32>
    %14 = tpu.matmul %12, %13, %cst_13 {dimension_numbers = #tpu.dot_dimension_numbers<[1], [0], [0], [1], [0, 0, 1, 1], [], []>} : vector<4x128xbf16>, vector<128x256xbf16>, vector<4x256xf32> -> vector<4x256xf32>
    %c0_14 = arith.constant 0 : index
    %c0_15 = arith.constant 0 : index
    %15 = vector.load %arg5[%c0_14, %c0_15] : memref<1x256xf32, #tpu.memory_space<vmem>>, vector<1x256xf32>
    %16 = vector.broadcast %15 : vector<1x256xf32> to vector<4x256xf32>
    %17 = arith.addf %14, %16 : vector<4x256xf32>
    %cst_16 = arith.constant 2.000000e-01 : f32
    %18 = vector.broadcast %cst_16 : f32 to vector<4x256xf32>
    %19 = arith.mulf %18, %17 : vector<4x256xf32>
    %20 = arith.maximumf %17, %19 : vector<4x256xf32>
    %cst_17 = arith.constant 0.000000e+00 : f32
    %21 = vector.broadcast %cst_17 : f32 to vector<9x256xf32>
    %c0_18 = arith.constant 0 : index
    %c0_19 = arith.constant 0 : index
    %22 = vector.load %arg12[%c0_18, %c0_19] : memref<9x256xf32, #tpu.memory_space<vmem>>, vector<9x256xf32>
    tpu.vector_store %arg12[%c0_18, %c0_19], %21 {strides = array<i32>} : memref<9x256xf32, #tpu.memory_space<vmem>>, vector<9x256xf32>,
    %23 = vector.extract_strided_slice %20 {offsets = [0, 0], sizes = [2, 256], strides = [1, 1]} : vector<4x256xf32> to vector<2x256xf32>
    %c4 = arith.constant 4 : index
    %c0_20 = arith.constant 0 : index
    %24 = vector.load %arg12[%c4, %c0_20] : memref<9x256xf32, #tpu.memory_space<vmem>>, vector<2x256xf32>
    tpu.vector_store %arg12[%c4, %c0_20], %23 {strides = array<i32>} : memref<9x256xf32, #tpu.memory_space<vmem>>, vector<2x256xf32>,
    %25 = vector.extract_strided_slice %20 {offsets = [2, 0], sizes = [2, 256], strides = [1, 1]} : vector<4x256xf32> to vector<2x256xf32>
    %c7 = arith.constant 7 : index
    %c0_21 = arith.constant 0 : index
    %26 = vector.load %arg12[%c7, %c0_21] : memref<9x256xf32, #tpu.memory_space<vmem>>, vector<2x256xf32>
    tpu.vector_store %arg12[%c7, %c0_21], %25 {strides = array<i32>} : memref<9x256xf32, #tpu.memory_space<vmem>>, vector<2x256xf32>,
    %c0_22 = arith.constant 0 : index
    %c0_23 = arith.constant 0 : index
    %27 = vector.load %arg12[%c0_22, %c0_23] : memref<9x256xf32, #tpu.memory_space<vmem>>, vector<9x256xf32>
    %28 = arith.truncf %27 : vector<9x256xf32> to vector<9x256xbf16>
    %c0_24 = arith.constant 0 : index
    %c0_25 = arith.constant 0 : index
    %29 = vector.load %arg6[%c0_24, %c0_25] : memref<256x512xbf16, #tpu.memory_space<vmem>>, vector<256x512xbf16>
    %cst_26 = arith.constant dense<0.000000e+00> : vector<9x512xf32>
    %30 = tpu.matmul %28, %29, %cst_26 {dimension_numbers = #tpu.dot_dimension_numbers<[1], [0], [0], [1], [0, 0, 1, 1], [], []>} : vector<9x256xbf16>, vector<256x512xbf16>, vector<9x512xf32> -> vector<9x512xf32>
    %c0_27 = arith.constant 0 : index
    %c0_28 = arith.constant 0 : index
    %31 = vector.load %arg7[%c0_27, %c0_28] : memref<1x512xf32, #tpu.memory_space<vmem>>, vector<1x512xf32>
    %32 = vector.broadcast %31 : vector<1x512xf32> to vector<9x512xf32>
    %33 = arith.addf %30, %32 : vector<9x512xf32>
    %cst_29 = arith.constant 2.000000e-01 : f32
    %34 = vector.broadcast %cst_29 : f32 to vector<9x512xf32>
    %35 = arith.mulf %34, %33 : vector<9x512xf32>
    %36 = arith.maximumf %33, %35 : vector<9x512xf32>
    %cst_30 = arith.constant 0.000000e+00 : f32
    %37 = vector.broadcast %cst_30 : f32 to vector<25x512xf32>
    %c0_31 = arith.constant 0 : index
    %c0_32 = arith.constant 0 : index
    %38 = vector.load %arg13[%c0_31, %c0_32] : memref<25x512xf32, #tpu.memory_space<vmem>>, vector<25x512xf32>
    tpu.vector_store %arg13[%c0_31, %c0_32], %37 {strides = array<i32>} : memref<25x512xf32, #tpu.memory_space<vmem>>, vector<25x512xf32>,
    %39 = vector.extract_strided_slice %36 {offsets = [0, 0], sizes = [3, 512], strides = [1, 1]} : vector<9x512xf32> to vector<3x512xf32>
    %c6 = arith.constant 6 : index
    %c0_33 = arith.constant 0 : index
    %40 = vector.load %arg13[%c6, %c0_33] : memref<25x512xf32, #tpu.memory_space<vmem>>, vector<3x512xf32>
    tpu.vector_store %arg13[%c6, %c0_33], %39 {strides = array<i32>} : memref<25x512xf32, #tpu.memory_space<vmem>>, vector<3x512xf32>,
    %41 = vector.extract_strided_slice %36 {offsets = [3, 0], sizes = [3, 512], strides = [1, 1]} : vector<9x512xf32> to vector<3x512xf32>
    %c11 = arith.constant 11 : index
    %c0_34 = arith.constant 0 : index
    %42 = vector.load %arg13[%c11, %c0_34] : memref<25x512xf32, #tpu.memory_space<vmem>>, vector<3x512xf32>
    tpu.vector_store %arg13[%c11, %c0_34], %41 {strides = array<i32>} : memref<25x512xf32, #tpu.memory_space<vmem>>, vector<3x512xf32>,
    %43 = vector.extract_strided_slice %36 {offsets = [6, 0], sizes = [3, 512], strides = [1, 1]} : vector<9x512xf32> to vector<3x512xf32>
    %c16 = arith.constant 16 : index
    %c0_35 = arith.constant 0 : index
    %44 = vector.load %arg13[%c16, %c0_35] : memref<25x512xf32, #tpu.memory_space<vmem>>, vector<3x512xf32>
    tpu.vector_store %arg13[%c16, %c0_35], %43 {strides = array<i32>} : memref<25x512xf32, #tpu.memory_space<vmem>>, vector<3x512xf32>,
    %c0_36 = arith.constant 0 : index
    %c0_37 = arith.constant 0 : index
    %45 = vector.load %arg13[%c0_36, %c0_37] : memref<25x512xf32, #tpu.memory_space<vmem>>, vector<25x512xf32>
    %46 = arith.truncf %45 : vector<25x512xf32> to vector<25x512xbf16>
    %c0_38 = arith.constant 0 : index
    %c0_39 = arith.constant 0 : index
    %47 = vector.load %arg8[%c0_38, %c0_39] : memref<512x128xbf16, #tpu.memory_space<vmem>>, vector<512x128xbf16>
    %cst_40 = arith.constant dense<0.000000e+00> : vector<25x128xf32>
    %48 = tpu.matmul %46, %47, %cst_40 {dimension_numbers = #tpu.dot_dimension_numbers<[1], [0], [0], [1], [0, 0, 1, 1], [], []>} : vector<25x512xbf16>, vector<512x128xbf16>, vector<25x128xf32> -> vector<25x128xf32>
    %c0_41 = arith.constant 0 : index
    %c0_42 = arith.constant 0 : index
    %49 = vector.load %arg9[%c0_41, %c0_42] : memref<1x128xf32, #tpu.memory_space<vmem>>, vector<1x128xf32>
    %50 = vector.broadcast %49 : vector<1x128xf32> to vector<25x128xf32>
    %51 = arith.addf %48, %50 : vector<25x128xf32>
    %cst_43 = arith.constant 2.000000e-01 : f32
    %52 = vector.broadcast %cst_43 : f32 to vector<25x128xf32>
    %53 = arith.mulf %52, %51 : vector<25x128xf32>
    %54 = arith.maximumf %51, %53 : vector<25x128xf32>
    %55 = arith.truncf %54 : vector<25x128xf32> to vector<25x128xbf16>
    %c0_44 = arith.constant 0 : index
    %c0_45 = arith.constant 0 : index
    %c0_46 = arith.constant 0 : index
    %56 = vector.load %arg10[%c0_44, %c0_45, %c0_46] : memref<1x25x128xbf16, #tpu.memory_space<vmem>>, vector<1x25x128xbf16>
    %57 = vector.shape_cast %56 : vector<1x25x128xbf16> to vector<25x128xbf16>
    %58 = vector.shape_cast %55 : vector<25x128xbf16> to vector<1x25x128xbf16>
    tpu.vector_store %arg10[%c0_44, %c0_45, %c0_46], %58 {strides = array<i32>} : memref<1x25x128xbf16, #tpu.memory_space<vmem>>, vector<1x25x128xbf16>,
    return
  }
  func.func @transform_0(%arg0: i32) -> (i32, i32, i32) {
    %c0_i32 = arith.constant 0 : i32
    %c0_i32_0 = arith.constant 0 : i32
    %c0_i32_1 = arith.constant 0 : i32
    return %arg0, %c0_i32, %c0_i32_0 : i32, i32, i32
  }
  func.func @transform_1(%arg0: i32) -> (i32, i32) {
    %c0_i32 = arith.constant 0 : i32
    %c0_i32_0 = arith.constant 0 : i32
    %c0_i32_1 = arith.constant 0 : i32
    return %c0_i32, %c0_i32_0 : i32, i32
  }
  func.func @transform_2(%arg0: i32) -> (i32, i32) {
    %c0_i32 = arith.constant 0 : i32
    %c0_i32_0 = arith.constant 0 : i32
    %c0_i32_1 = arith.constant 0 : i32
    return %c0_i32, %c0_i32_0 : i32, i32
  }
  func.func @transform_3(%arg0: i32) -> (i32, i32) {
    %c0_i32 = arith.constant 0 : i32
    %c0_i32_0 = arith.constant 0 : i32
    %c0_i32_1 = arith.constant 0 : i32
    return %c0_i32, %c0_i32_0 : i32, i32
  }
  func.func @transform_4(%arg0: i32) -> (i32, i32) {
    %c0_i32 = arith.constant 0 : i32
    %c0_i32_0 = arith.constant 0 : i32
    %c0_i32_1 = arith.constant 0 : i32
    return %c0_i32, %c0_i32_0 : i32, i32
  }
  func.func @transform_5(%arg0: i32) -> (i32, i32) {
    %c0_i32 = arith.constant 0 : i32
    %c0_i32_0 = arith.constant 0 : i32
    %c0_i32_1 = arith.constant 0 : i32
    return %c0_i32, %c0_i32_0 : i32, i32
  }
  func.func @transform_6(%arg0: i32) -> (i32, i32) {
    %c0_i32 = arith.constant 0 : i32
    %c0_i32_0 = arith.constant 0 : i32
    %c0_i32_1 = arith.constant 0 : i32
    return %c0_i32, %c0_i32_0 : i32, i32
  }
  func.func @transform_7(%arg0: i32) -> (i32, i32) {
    %c0_i32 = arith.constant 0 : i32
    %c0_i32_0 = arith.constant 0 : i32
    %c0_i32_1 = arith.constant 0 : i32
    return %c0_i32, %c0_i32_0 : i32, i32
  }
  func.func @transform_8(%arg0: i32) -> (i32, i32) {
    %c0_i32 = arith.constant 0 : i32
    %c0_i32_0 = arith.constant 0 : i32
    %c0_i32_1 = arith.constant 0 : i32
    return %c0_i32, %c0_i32_0 : i32, i32
  }
  func.func @transform_9(%arg0: i32) -> (i32, i32, i32) {
    %c0_i32 = arith.constant 0 : i32
    %c0_i32_0 = arith.constant 0 : i32
    %c0_i32_1 = arith.constant 0 : i32
    return %arg0, %c0_i32, %c0_i32_0 : i32, i32, i32
  }
}

</mosaic_0001>

<llo_original>
// kernel: discrimiter_net_forward.1
$region0: #{discrimiter_net_forward.1}
  #allocation0 [shape = 'u32[]', space=smem, size = 0x4, offset = 0x4, fixed_abs, tag = 'smem constant byte address 0x4 - core index']
  #allocation1 [shape = 'u32[144,128]{1,0:T(1,128)}', space=vmem, size = 0x12000, scoped, tag = 'internal scratch']
  #allocation2 [shape = 'f32[4,128]{1,0:T(4,128)}', space=vmem, size = 0x800, scoped, tag = 'scratch operand']
  #allocation3 [shape = 'f32[9,256]{1,0:T(8,128)}', space=vmem, size = 0x4000, scoped, tag = 'scratch operand']
  #allocation4 [shape = 'f32[25,512]{1,0:T(8,128)}', space=vmem, size = 0x10000, scoped, tag = 'scratch operand']
  %s0 = inlined_call_operand.vmem [shape: bf16[2,4,64], index: 0, kind: input, shape index: {}]
  %s1 = inlined_call_operand.vmem [shape: bf16[64,128], index: 1, kind: input, shape index: {}]
  %s2 = inlined_call_operand.vmem [shape: f32[1,128], index: 2, kind: input, shape index: {}]
  %s3 = inlined_call_operand.vmem [shape: bf16[128,256], index: 3, kind: input, shape index: {}]
  %s4 = inlined_call_operand.vmem [shape: f32[1,256], index: 4, kind: input, shape index: {}]
  %s5 = inlined_call_operand.vmem [shape: bf16[256,512], index: 5, kind: input, shape index: {}]
  %s6 = inlined_call_operand.vmem [shape: f32[1,512], index: 6, kind: input, shape index: {}]
  %s7 = inlined_call_operand.vmem [shape: bf16[512,128], index: 7, kind: input, shape index: {}]
  %s8 = inlined_call_operand.vmem [shape: f32[1,128], index: 8, kind: input, shape index: {}]
  %s9 = inlined_call_operand.vmem [shape: bf16[2,25,128], index: 9, kind: output, shape index: {}]
  %s10 = sld [smem:[#allocation0]]
  $region69: #{discrimiter_net_forward.1} parent=0
    _
  %s12 = ssub.s32 1, %s10
  %s13 = scalar_select 0, %s12, %s10
  loop: start=0, step=1, limit=4
  $region2: #{discrimiter_net_forward.1} parent=0 // loop_pre_header
    _
  $region3: #{discrimiter_net_forward.1} parent=0 // loop_header
    %s15 = sphi 0, %s19
    %p16 = scmp.ge.s32.totalorder %s15, 4
    %s25 = sphi 0, %s27
    %s28 = sphi 0, %s25
    %s29 = sphi 0, %s28
    %s45 = sphi 0, %s29
    %s49 = sphi 0, %s49
    %s51 = sphi 0, %s49
    %s52 = sphi 0, %s51
    %s66 = sphi 0, %s52
    %s70 = sphi 0, %s70
    %s72 = sphi 0, %s70
    %s73 = sphi 0, %s72
    %s87 = sphi 0, %s73
    %s91 = sphi 0, %s91
    %s93 = sphi 0, %s91
    %s94 = sphi 0, %s93
    %s108 = sphi 0, %s94
    %s112 = sphi 0, %s112
    %s114 = sphi 0, %s112
    %s115 = sphi 0, %s114
    %s129 = sphi 0, %s115
    %s133 = sphi 0, %s133
    %s135 = sphi 0, %s133
    %s136 = sphi 0, %s135
    %s150 = sphi 0, %s136
    %s154 = sphi 0, %s154
    %s156 = sphi 0, %s154
    %s157 = sphi 0, %s156
    %s171 = sphi 0, %s157
    %s175 = sphi 0, %s175
    %s177 = sphi 0, %s175
    %s178 = sphi 0, %s177
    %s192 = sphi 0, %s178
    %s196 = sphi 0, %s196
    %s198 = sphi 0, %s196
    %s199 = sphi 0, %s198
    %s213 = sphi 0, %s199
    %s219 = sphi 0, %s221
    %s222 = sphi 0, %s219
    %s223 = sphi 0, %s222
    %s239 = sphi 0, %s223
  $region4: #{discrimiter_net_forward.1} parent=0 // loop_header_branch
    %18 = sbr.rel (%p16) target = $region8
  $region5: #{discrimiter_net_forward.1} parent=0 // loop_body
    %s20 = ssub.s32 %s15, 1
    %s21 = ssub.s32 %s15, 2
    %s22 = sadd.s32 %s15, 1
    %s23 = ssub.s32 %s15, %s22
    %p24 = scmp.eq.s32.totalorder %s23, 0
    %s26 = sadd.s32 %s25, 1
    %s27 = scalar_select %p24, %s25, %s26
    %p30 = pneg %p24
    %p31 = scmp.eq.s32.totalorder %s15, 1
    %p32 = por %p30, %p31
    %p33 = scmp.ne.s32.totalorder %s25, %s28
    %p34 = scmp.eq.s32.totalorder %s15, 0
    %p35 = por %p33, %p34
    %p36 = scmp.ne.s32.totalorder %s25, %s28
    %p37 = scmp.eq.s32.totalorder %s20, 1
    %p38 = por %p36, %p37
    %p39 = scmp.ne.s32.totalorder %s28, %s29
    %p40 = scmp.eq.s32.totalorder %s20, 0
    %p41 = por %p39, %p40
    %p42 = scmp.ne.s32.totalorder %s28, %s29
    %p43 = scmp.eq.s32.totalorder %s21, 1
    %p44 = por %p42, %p43
    %p46 = scmp.ne.s32.totalorder %s29, %s45
    %p47 = scmp.eq.s32.totalorder %s21, 0
    %p48 = por %p46, %p47
    %s50 = sadd.s32 %s49, 1
    %p53 = scmp.eq.s32.totalorder %s15, 1
    %p54 = scmp.ne.s32.totalorder %s49, %s51
    %p55 = scmp.eq.s32.totalorder %s15, 0
    %p56 = por %p54, %p55
    %p57 = scmp.ne.s32.totalorder %s49, %s51
    %p58 = scmp.eq.s32.totalorder %s20, 1
    %p59 = por %p57, %p58
    %p60 = scmp.ne.s32.totalorder %s51, %s52
    %p61 = scmp.eq.s32.totalorder %s20, 0
    %p62 = por %p60, %p61
    %p63 = scmp.ne.s32.totalorder %s51, %s52
    %p64 = scmp.eq.s32.totalorder %s21, 1
    %p65 = por %p63, %p64
    %p67 = scmp.ne.s32.totalorder %s52, %s66
    %p68 = scmp.eq.s32.totalorder %s21, 0
    %p69 = por %p67, %p68
    %s71 = sadd.s32 %s70, 1
    %p74 = scmp.eq.s32.totalorder %s15, 1
    %p75 = scmp.ne.s32.totalorder %s70, %s72
    %p76 = scmp.eq.s32.totalorder %s15, 0
    %p77 = por %p75, %p76
    %p78 = scmp.ne.s32.totalorder %s70, %s72
    %p79 = scmp.eq.s32.totalorder %s20, 1
    %p80 = por %p78, %p79
    %p81 = scmp.ne.s32.totalorder %s72, %s73
    %p82 = scmp.eq.s32.totalorder %s20, 0
    %p83 = por %p81, %p82
    %p84 = scmp.ne.s32.totalorder %s72, %s73
    %p85 = scmp.eq.s32.totalorder %s21, 1
    %p86 = por %p84, %p85
    %p88 = scmp.ne.s32.totalorder %s73, %s87
    %p89 = scmp.eq.s32.totalorder %s21, 0
    %p90 = por %p88, %p89
    %s92 = sadd.s32 %s91, 1
    %p95 = scmp.eq.s32.totalorder %s15, 1
    %p96 = scmp.ne.s32.totalorder %s91, %s93
    %p97 = scmp.eq.s32.totalorder %s15, 0
    %p98 = por %p96, %p97
    %p99 = scmp.ne.s32.totalorder %s91, %s93
    %p100 = scmp.eq.s32.totalorder %s20, 1
    %p101 = por %p99, %p100
    %p102 = scmp.ne.s32.totalorder %s93, %s94
    %p103 = scmp.eq.s32.totalorder %s20, 0
    %p104 = por %p102, %p103
    %p105 = scmp.ne.s32.totalorder %s93, %s94
    %p106 = scmp.eq.s32.totalorder %s21, 1
    %p107 = por %p105, %p106
    %p109 = scmp.ne.s32.totalorder %s94, %s108
    %p110 = scmp.eq.s32.totalorder %s21, 0
    %p111 = por %p109, %p110
    %s113 = sadd.s32 %s112, 1
    %p116 = scmp.eq.s32.totalorder %s15, 1
    %p117 = scmp.ne.s32.totalorder %s112, %s114
    %p118 = scmp.eq.s32.totalorder %s15, 0
    %p119 = por %p117, %p118
    %p120 = scmp.ne.s32.totalorder %s112, %s114
    %p121 = scmp.eq.s32.totalorder %s20, 1
    %p122 = por %p120, %p121
    %p123 = scmp.ne.s32.totalorder %s114, %s115
    %p124 = scmp.eq.s32.totalorder %s20, 0
    %p125 = por %p123, %p124
    %p126 = scmp.ne.s32.totalorder %s114, %s115
    %p127 = scmp.eq.s32.totalorder %s21, 1
    %p128 = por %p126, %p127
    %p130 = scmp.ne.s32.totalorder %s115, %s129
    %p131 = scmp.eq.s32.totalorder %s21, 0
    %p132 = por %p130, %p131
    %s134 = sadd.s32 %s133, 1
    %p137 = scmp.eq.s32.totalorder %s15, 1
    %p138 = scmp.ne.s32.totalorder %s133, %s135
    %p139 = scmp.eq.s32.totalorder %s15, 0
    %p140 = por %p138, %p139
    %p141 = scmp.ne.s32.totalorder %s133, %s135
    %p142 = scmp.eq.s32.totalorder %s20, 1
    %p143 = por %p141, %p142
    %p144 = scmp.ne.s32.totalorder %s135, %s136
    %p145 = scmp.eq.s32.totalorder %s20, 0
    %p146 = por %p144, %p145
    %p147 = scmp.ne.s32.totalorder %s135, %s136
    %p148 = scmp.eq.s32.totalorder %s21, 1
    %p149 = por %p147, %p148
    %p151 = scmp.ne.s32.totalorder %s136, %s150
    %p152 = scmp.eq.s32.totalorder %s21, 0
    %p153 = por %p151, %p152
    %s155 = sadd.s32 %s154, 1
    %p158 = scmp.eq.s32.totalorder %s15, 1
    %p159 = scmp.ne.s32.totalorder %s154, %s156
    %p160 = scmp.eq.s32.totalorder %s15, 0
    %p161 = por %p159, %p160
    %p162 = scmp.ne.s32.totalorder %s154, %s156
    %p163 = scmp.eq.s32.totalorder %s20, 1
    %p164 = por %p162, %p163
    %p165 = scmp.ne.s32.totalorder %s156, %s157
    %p166 = scmp.eq.s32.totalorder %s20, 0
    %p167 = por %p165, %p166
    %p168 = scmp.ne.s32.totalorder %s156, %s157
    %p169 = scmp.eq.s32.totalorder %s21, 1
    %p170 = por %p168, %p169
    %p172 = scmp.ne.s32.totalorder %s157, %s171
    %p173 = scmp.eq.s32.totalorder %s21, 0
    %p174 = por %p172, %p173
    %s176 = sadd.s32 %s175, 1
    %p179 = scmp.eq.s32.totalorder %s15, 1
    %p180 = scmp.ne.s32.totalorder %s175, %s177
    %p181 = scmp.eq.s32.totalorder %s15, 0
    %p182 = por %p180, %p181
    %p183 = scmp.ne.s32.totalorder %s175, %s177
    %p184 = scmp.eq.s32.totalorder %s20, 1
    %p185 = por %p183, %p184
    %p186 = scmp.ne.s32.totalorder %s177, %s178
    %p187 = scmp.eq.s32.totalorder %s20, 0
    %p188 = por %p186, %p187
    %p189 = scmp.ne.s32.totalorder %s177, %s178
    %p190 = scmp.eq.s32.totalorder %s21, 1
    %p191 = por %p189, %p190
    %p193 = scmp.ne.s32.totalorder %s178, %s192
    %p194 = scmp.eq.s32.totalorder %s21, 0
    %p195 = por %p193, %p194
    %s197 = sadd.s32 %s196, 1
    %p200 = scmp.eq.s32.totalorder %s15, 1
    %p201 = scmp.ne.s32.totalorder %s196, %s198
    %p202 = scmp.eq.s32.totalorder %s15, 0
    %p203 = por %p201, %p202
    %p204 = scmp.ne.s32.totalorder %s196, %s198
    %p205 = scmp.eq.s32.totalorder %s20, 1
    %p206 = por %p204, %p205
    %p207 = scmp.ne.s32.totalorder %s198, %s199
    %p208 = scmp.eq.s32.totalorder %s20, 0
    %p209 = por %p207, %p208
    %p210 = scmp.ne.s32.totalorder %s198, %s199
    %p211 = scmp.eq.s32.totalorder %s21, 1
    %p212 = por %p210, %p211
    %p214 = scmp.ne.s32.totalorder %s199, %s213
    %p215 = scmp.eq.s32.totalorder %s21, 0
    %p216 = por %p214, %p215
    %s217 = ssub.s32 %s15, %s22
    %p218 = scmp.eq.s32.totalorder %s217, 0
    %s220 = sadd.s32 %s219, 1
    %s221 = scalar_select %p218, %s219, %s220
    %p224 = pneg %p218
    %p225 = scmp.eq.s32.totalorder %s15, 1
    %p226 = por %p224, %p225
    %p227 = scmp.ne.s32.totalorder %s219, %s222
    %p228 = scmp.eq.s32.totalorder %s15, 0
    %p229 = por %p227, %p228
    %p230 = scmp.ne.s32.totalorder %s219, %s222
    %p231 = scmp.eq.s32.totalorder %s20, 1
    %p232 = por %p230, %p231
    %p233 = scmp.ne.s32.totalorder %s222, %s223
    %p234 = scmp.eq.s32.totalorder %s20, 0
    %p235 = por %p233, %p234
    %p236 = scmp.ne.s32.totalorder %s222, %s223
    %p237 = scmp.eq.s32.totalorder %s21, 1
    %p238 = por %p236, %p237
    %p240 = scmp.ne.s32.totalorder %s223, %s239
    %p241 = scmp.eq.s32.totalorder %s21, 0
    %p242 = por %p240, %p241
    %p243 = scmp.le.s32.totalorder 1, %s15
    %p244 = scmp.lt.s32.totalorder %s15, 3
    %p245 = pnand %p243, %p244
    %p246 = pneg %p245
    // Predicated region
    $region9: #{discrimiter_net_forward.1} parent=5 // pred_check
      _
    $region10: #{discrimiter_net_forward.1} parent=5 // pred_check_branch
      %248 = sbr.rel (%p245) target = $region12
    $region11: #{discrimiter_net_forward.1} parent=5 // pred_region
      %s249 = ssub.s32 %s15, 1
      // Predicated region
      $region13: #{discrimiter_net_forward.1} parent=11 // pred_check
        %p250 = pneg %p62
      $region14: #{discrimiter_net_forward.1} parent=11 // pred_check_branch
        %252 = sbr.rel (%p250) target = $region16
      $region15: #{discrimiter_net_forward.1} parent=11 // pred_region
        _
      $region16: #{discrimiter_net_forward.1} parent=11 // pred_fallthru
        _
      // Predicated region
      $region17: #{discrimiter_net_forward.1} parent=11 // pred_check
        %p253 = pneg %p83
      $region18: #{discrimiter_net_forward.1} parent=11 // pred_check_branch
        %255 = sbr.rel (%p253) target = $region20
      $region19: #{discrimiter_net_forward.1} parent=11 // pred_region
        _
      $region20: #{discrimiter_net_forward.1} parent=11 // pred_fallthru
        _
      // Predicated region
      $region21: #{discrimiter_net_forward.1} parent=11 // pred_check
        %p256 = pneg %p104
      $region22: #{discrimiter_net_forward.1} parent=11 // pred_check_branch
        %258 = sbr.rel (%p256) target = $region24
      $region23: #{discrimiter_net_forward.1} parent=11 // pred_region
        _
      $region24: #{discrimiter_net_forward.1} parent=11 // pred_fallthru
        _
      // Predicated region
      $region25: #{discrimiter_net_forward.1} parent=11 // pred_check
        %p259 = pneg %p125
      $region26: #{discrimiter_net_forward.1} parent=11 // pred_check_branch
        %261 = sbr.rel (%p259) target = $region28
      $region27: #{discrimiter_net_forward.1} parent=11 // pred_region
        _
      $region28: #{discrimiter_net_forward.1} parent=11 // pred_fallthru
        _
      // Predicated region
      $region29: #{discrimiter_net_forward.1} parent=11 // pred_check
        %p262 = pneg %p146
      $region30: #{discrimiter_net_forward.1} parent=11 // pred_check_branch
        %264 = sbr.rel (%p262) target = $region32
      $region31: #{discrimiter_net_forward.1} parent=11 // pred_region
        _
      $region32: #{discrimiter_net_forward.1} parent=11 // pred_fallthru
        _
      // Predicated region
      $region33: #{discrimiter_net_forward.1} parent=11 // pred_check
        %p265 = pneg %p167
      $region34: #{discrimiter_net_forward.1} parent=11 // pred_check_branch
        %267 = sbr.rel (%p265) target = $region36
      $region35: #{discrimiter_net_forward.1} parent=11 // pred_region
        _
      $region36: #{discrimiter_net_forward.1} parent=11 // pred_fallthru
        _
      // Predicated region
      $region37: #{discrimiter_net_forward.1} parent=11 // pred_check
        %p268 = pneg %p188
      $region38: #{discrimiter_net_forward.1} parent=11 // pred_check_branch
        %270 = sbr.rel (%p268) target = $region40
      $region39: #{discrimiter_net_forward.1} parent=11 // pred_region
        _
      $region40: #{discrimiter_net_forward.1} parent=11 // pred_fallthru
        _
      // Predicated region
      $region41: #{discrimiter_net_forward.1} parent=11 // pred_check
        %p271 = pneg %p209
      $region42: #{discrimiter_net_forward.1} parent=11 // pred_check_branch
        %273 = sbr.rel (%p271) target = $region44
      $region43: #{discrimiter_net_forward.1} parent=11 // pred_region
        _
      $region44: #{discrimiter_net_forward.1} parent=11 // pred_fallthru
        _
    $region12: #{discrimiter_net_forward.1} parent=5 // pred_fallthru
      _
    %p274 = scmp.lt.s32.totalorder %s15, 2
    // Predicated region
    $region45: #{discrimiter_net_forward.1} parent=5 // pred_check
      %p275 = pneg %p274
    $region46: #{discrimiter_net_forward.1} parent=5 // pred_check_branch
      %277 = sbr.rel (%p275) target = $region48
    $region47: #{discrimiter_net_forward.1} parent=5 // pred_region
      // Predicated region
      $region49: #{discrimiter_net_forward.1} parent=47 // pred_check
        %p278 = pneg %p35
      $region50: #{discrimiter_net_forward.1} parent=47 // pred_check_branch
        %280 = sbr.rel (%p278) target = $region52
      $region51: #{discrimiter_net_forward.1} parent=47 // pred_region
        %p281 = scmp.lt.s32.totalorder %s15, 1
        %s282 = scalar_select %p281, %s15, 1
        %s283 = smul.addr %s282, 2
        %s284 = scalar_lea.vmem %s0, %s283
      $region52: #{discrimiter_net_forward.1} parent=47 // pred_fallthru
        _
    $region48: #{discrimiter_net_forward.1} parent=5 // pred_fallthru
      _
    %p285 = scmp.le.s32.totalorder 1, %s15
    %p286 = scmp.lt.s32.totalorder %s15, 3
    %p287 = pnand %p285, %p286
    %p288 = pneg %p287
    // Predicated region
    $region53: #{discrimiter_net_forward.1} parent=5 // pred_check
      _
    $region54: #{discrimiter_net_forward.1} parent=5 // pred_check_branch
      %290 = sbr.rel (%p287) target = $region56
    $region55: #{discrimiter_net_forward.1} parent=5 // pred_region
      %s291 = ssub.s32 %s15, 1
      %p292 = scmp.lt.s32.totalorder %s20, 1
      %s293 = scalar_select %p292, %s20, 1
      %s294 = smul.addr %s293, 2
      %s295 = scalar_lea.vmem %s0, %s294
      %p296 = pneg %p41
      %p297 = pneg %p38
      %p298 = pneg %p62
      %p299 = pneg %p59
      %p300 = pneg %p83
      %p301 = pneg %p80
      %p302 = pneg %p104
      %p303 = pneg %p101
      %p304 = pneg %p125
      %p305 = pneg %p122
      %p306 = pneg %p146
      %p307 = pneg %p143
      %p308 = pneg %p167
      %p309 = pneg %p164
      %p310 = pneg %p188
      %p311 = pneg %p185
      %p312 = pneg %p209
      %p313 = pneg %p206
      %p314 = pneg %p235
      %p315 = pneg %p232
      %p316 = scmp.lt.s32.totalorder %s20, 1
      %s317 = scalar_select %p316, %s20, 1
      %s318 = smul.addr %s317, 4
      %s319 = smul.addr %s318, 4
      %s320 = scalar_lea.vmem %s9, %s319
      %p321 = scmp.lt.s32.totalorder %s20, 1
      %s322 = scalar_select %p321, %s20, 1
      %s323 = smul.addr %s322, 2
      %s324 = scalar_lea.vmem %s0, %s323
      %p325 = scmp.lt.s32.totalorder %s20, 1
      %s326 = scalar_select %p325, %s20, 1
      %s327 = smul.addr %s326, 4
      %s328 = smul.addr %s327, 4
      %s329 = scalar_lea.vmem %s9, %s328
      %v331 = vld [vmem:[%s324] sm:$0x3]
      %v332 = vld [vmem:[%s1] sm:$0xf]
      %v333 = vld [vmem:[%s1 + $0x4] sm:$0xf]
      %v334 = vld [vmem:[%s1 + $0x8] sm:$0xf]
      %v335 = vld [vmem:[%s1 + $0xc] sm:$0xf]
      %v336 = vld [vmem:[%s1 + $0x10] sm:$0xf]
      %v337 = vld [vmem:[%s1 + $0x14] sm:$0xf]
      %v338 = vld [vmem:[%s1 + $0x18] sm:$0xf]
      %v339 = vld [vmem:[%s1 + $0x1c] sm:$0xf]
      %v340 = vld [vmem:[%s2] sm:$0x1]
      %v342 = vlaneseq
      %v343 = vshrl.u32 %v342, 7
      %v344 = vsub.s32 0, %v343
      %v345 = vrot.slane %v340, %v344
      %v355 = vunpack.c.l.b16 %v332
      %v356 = vunpack.c.l.b16 %v333
      %v357 = vunpack.c.l.b16 %v334
      %v358 = vunpack.c.l.b16 %v335
      %v359 = vunpack.c.l.b16 %v336
      %v360 = vunpack.c.l.b16 %v337
      %v361 = vunpack.c.l.b16 %v338
      %v362 = vunpack.c.l.b16 %v339
      %v363 = vpack.c.b16 %v356, %v355
      %v364 = vpack.c.b16 %v358, %v357
      %v365 = vpack.c.b16 %v360, %v359
      %v366 = vpack.c.b16 %v362, %v361
      %vm371 = vcmask 523264
      %v373 = vsel %vm371, %v331, 0
      %375 = vmatprep.subr.bf16.mxu0 0
      %376 = vmatpush1.bf16.msra.mxu0 %v363
      %377 = vmatprep.subr.bf16.mxu0 0
      %378 = vmatpush1.bf16.msra.mxu0 %v364
      %379 = vmatprep.subr.bf16.mxu0 0
      %380 = vmatpush1.bf16.msra.mxu0 %v365
      %381 = vmatprep.subr.bf16.mxu0 0
      %382 = vmatpush1.bf16.msra.mxu0 %v366
      %383 = vmatprep.subr.bf16.mxu0 0
      %384 = vmatpush1.bf16.msra.mxu0 0
      %385 = vmatprep.subr.bf16.mxu0 0
      %386 = vmatpush1.bf16.msra.mxu0 0
      %387 = vmatprep.subr.bf16.mxu0 0
      %388 = vmatpush1.bf16.msra.mxu0 0
      %389 = vmatprep.subr.bf16.mxu0 0
      %390 = vmatpush1.bf16.msra.mxu0 0
      %391 = vmatprep.subr.bf16.mxu0 0
      %392 = vmatpush1.bf16.msra.mxu0 0
      %393 = vmatprep.subr.bf16.mxu0 0
      %394 = vmatpush1.bf16.msra.mxu0 0
      %395 = vmatprep.subr.bf16.mxu0 0
      %396 = vmatpush1.bf16.msra.mxu0 0
      %397 = vmatprep.subr.bf16.mxu0 0
      %398 = vmatpush1.bf16.msra.mxu0 0
      %399 = vmatprep.subr.bf16.mxu0 0
      %400 = vmatpush1.bf16.msra.mxu0 0
      %401 = vmatprep.subr.bf16.mxu0 0
      %402 = vmatpush1.bf16.msra.mxu0 0
      %403 = vmatprep.subr.bf16.mxu0 0
      %404 = vmatpush1.bf16.msra.mxu0 0
      %405 = vmatprep.subr.bf16.mxu0 0
      %406 = vmatpush1.bf16.msra.mxu0 0
      %407 = vmatprep.mubr.bf16.mxu0 0
      %408 = vmatmul.mubr.bf16.gmra.mrb[0].mxu0 %v373
      %v409 = vpop.f32.mrb[0].mxu0
      %v410 = vadd.f32 %v345, %v409
      %v411 = vpop.f32.mrb[0].mxu0
      %v412 = vpop.f32.mrb[0].mxu0
      %v413 = vpop.f32.mrb[0].mxu0
      %414 = vdwg.mxu0
      %v415 = vmul.f32 %v410, 0.2
      %v416 = vmax.f32 %v410, %v415
      %417 = vst [vmem:[#allocation2] sm:$0xf] %v416
      %v418 = vld [vmem:[#allocation2] sm:$0xf]
      %v419 = vpack.c.bf16 %v418, %v418
      %v420 = vld [vmem:[%s3] sm:$0xff]
      %v421 = vld [vmem:[%s3 + $0x8] sm:$0xff]
      %v422 = vld [vmem:[%s3 + $0x10] sm:$0xff]
      %v423 = vld [vmem:[%s3 + $0x18] sm:$0xff]
      %v424 = vld [vmem:[%s3 + $0x20] sm:$0xff]
      %v425 = vld [vmem:[%s3 + $0x28] sm:$0xff]
      %v426 = vld [vmem:[%s3 + $0x30] sm:$0xff]
      %v427 = vld [vmem:[%s3 + $0x38] sm:$0xff]
      %v428 = vld [vmem:[%s3 + $0x40] sm:$0xff]
      %v429 = vld [vmem:[%s3 + $0x48] sm:$0xff]
      %v430 = vld [vmem:[%s3 + $0x50] sm:$0xff]
      %v431 = vld [vmem:[%s3 + $0x58] sm:$0xff]
      %v432 = vld [vmem:[%s3 + $0x60] sm:$0xff]
      %v433 = vld [vmem:[%s3 + $0x68] sm:$0xff]
      %v434 = vld [vmem:[%s3 + $0x70] sm:$0xff]
      %v435 = vld [vmem:[%s3 + $0x78] sm:$0xff]
      %v436 = vld [vmem:[%s4] sm:$0x3]
      %v438 = vlaneseq
      %v439 = vshrl.u32 %v438, 7
      %v440 = vsub.s32 0, %v439
      %v441 = vrot.slane %v436, %v440
      %v442 = vlaneseq
      %v443 = vshrl.u32 %v442, 7
      %v444 = vsub.s32 1, %v443
      %v445 = vrot.slane %v436, %v444
      %v464 = vunpack.c.l.b16 %v420
      %v465 = vunpack.c.h.b16 %v420
      %v466 = vunpack.c.l.b16 %v421
      %v467 = vunpack.c.h.b16 %v421
      %v468 = vunpack.c.l.b16 %v422
      %v469 = vunpack.c.h.b16 %v422
      %v470 = vunpack.c.l.b16 %v423
      %v471 = vunpack.c.h.b16 %v423
      %v472 = vunpack.c.l.b16 %v424
      %v473 = vunpack.c.h.b16 %v424
      %v474 = vunpack.c.l.b16 %v425
      %v475 = vunpack.c.h.b16 %v425
      %v476 = vunpack.c.l.b16 %v426
      %v477 = vunpack.c.h.b16 %v426
      %v478 = vunpack.c.l.b16 %v427
      %v479 = vunpack.c.h.b16 %v427
      %v480 = vunpack.c.l.b16 %v428
      %v481 = vunpack.c.h.b16 %v428
      %v482 = vunpack.c.l.b16 %v429
      %v483 = vunpack.c.h.b16 %v429
      %v484 = vunpack.c.l.b16 %v430
      %v485 = vunpack.c.h.b16 %v430
      %v486 = vunpack.c.l.b16 %v431
      %v487 = vunpack.c.h.b16 %v431
      %v488 = vunpack.c.l.b16 %v432
      %v489 = vunpack.c.h.b16 %v432
      %v490 = vunpack.c.l.b16 %v433
      %v491 = vunpack.c.h.b16 %v433
      %v492 = vunpack.c.l.b16 %v434
      %v493 = vunpack.c.h.b16 %v434
      %v494 = vunpack.c.l.b16 %v435
      %v495 = vunpack.c.h.b16 %v435
      %v496 = vpack.c.b16 %v466, %v464
      %v497 = vpack.c.b16 %v467, %v465
      %v498 = vpack.c.b16 %v470, %v468
      %v499 = vpack.c.b16 %v471, %v469
      %v500 = vpack.c.b16 %v474, %v472
      %v501 = vpack.c.b16 %v475, %v473
      %v502 = vpack.c.b16 %v478, %v476
      %v503 = vpack.c.b16 %v479, %v477
      %v504 = vpack.c.b16 %v482, %v480
      %v505 = vpack.c.b16 %v483, %v481
      %v506 = vpack.c.b16 %v486, %v484
      %v507 = vpack.c.b16 %v487, %v485
      %v508 = vpack.c.b16 %v490, %v488
      %v509 = vpack.c.b16 %v491, %v489
      %v510 = vpack.c.b16 %v494, %v492
      %v511 = vpack.c.b16 %v495, %v493
      %528 = vmatprep.subr.bf16.mxu0 %v497
      %529 = vmatpush1.bf16.msra.mxu0 %v496
      %530 = vmatprep.subr.bf16.mxu0 %v499
      %531 = vmatpush1.bf16.msra.mxu0 %v498
      %532 = vmatprep.subr.bf16.mxu0 %v501
      %533 = vmatpush1.bf16.msra.mxu0 %v500
      %534 = vmatprep.subr.bf16.mxu0 %v503
      %535 = vmatpush1.bf16.msra.mxu0 %v502
      %536 = vmatprep.subr.bf16.mxu0 %v505
      %537 = vmatpush1.bf16.msra.mxu0 %v504
      %538 = vmatprep.subr.bf16.mxu0 %v507
      %539 = vmatpush1.bf16.msra.mxu0 %v506
      %540 = vmatprep.subr.bf16.mxu0 %v509
      %541 = vmatpush1.bf16.msra.mxu0 %v508
      %542 = vmatprep.subr.bf16.mxu0 %v511
      %543 = vmatpush1.bf16.msra.mxu0 %v510
      %544 = vmatprep.subr.bf16.mxu0 0
      %545 = vmatpush1.bf16.msra.mxu0 0
      %546 = vmatprep.subr.bf16.mxu0 0
      %547 = vmatpush1.bf16.msra.mxu0 0
      %548 = vmatprep.subr.bf16.mxu0 0
      %549 = vmatpush1.bf16.msra.mxu0 0
      %550 = vmatprep.subr.bf16.mxu0 0
      %551 = vmatpush1.bf16.msra.mxu0 0
      %552 = vmatprep.subr.bf16.mxu0 0
      %553 = vmatpush1.bf16.msra.mxu0 0
      %554 = vmatprep.subr.bf16.mxu0 0
      %555 = vmatpush1.bf16.msra.mxu0 0
      %556 = vmatprep.subr.bf16.mxu0 0
      %557 = vmatpush1.bf16.msra.mxu0 0
      %558 = vmatprep.subr.bf16.mxu0 0
      %559 = vmatpush1.bf16.msra.mxu0 0
      %560 = vmatprep.mubr.bf16.mxu0 0
      %561 = vmatmul.mubr.bf16.gmra.mrb[0].mxu0 %v419
      %v562 = vpop.f32.mrb[0].mxu0
      %v563 = vadd.f32 %v441, %v562
      %v564 = vpop.f32.mrb[0].mxu0
      %v565 = vadd.f32 %v445, %v564
      %v566 = vpop.f32.mrb[0].mxu0
      %v567 = vpop.f32.mrb[0].mxu0
      %568 = vdwg.mxu0
      %v569 = vmul.f32 %v563, 0.2
      %v570 = vmul.f32 %v565, 0.2
      %v571 = vmax.f32 %v563, %v569
      %v572 = vmax.f32 %v565, %v570
      %573 = vst [vmem:[#allocation3] sm:$0xff] 0.0
      %574 = vst [vmem:[#allocation3 + $0x8] sm:$0xff] 0.0
      %575 = vst [vmem:[#allocation3 + $0x10] sm:$0x1] 0.0
      %576 = vst [vmem:[#allocation3 + $0x18] sm:$0x1] 0.0
      %v579 = vrot.slane %v571, 4
      %v580 = vrot.slane %v572, 4
      %583 = vst [vmem:[#allocation3] sm:$0x30] %v579
      %584 = vst [vmem:[#allocation3 + $0x8] sm:$0x30] %v580
      %v585 = vrot.slane %v571, 3
      %v586 = vrot.slane %v572, 3
      %589 = vst [vmem:[#allocation3] sm:$0x80] %v585
      %590 = vst [vmem:[#allocation3 + $0x8] sm:$0x80] %v586
      %591 = vst [vmem:[#allocation3 + $0x10] sm:$0x1] %v585
      %592 = vst [vmem:[#allocation3 + $0x18] sm:$0x1] %v586
      %v593 = vld [vmem:[#allocation3] sm:$0xff]
      %v594 = vld [vmem:[#allocation3 + $0x8] sm:$0xff]
      %v595 = vld [vmem:[#allocation3 + $0x10] sm:$0x1]
      %v596 = vld [vmem:[#allocation3 + $0x18] sm:$0x1]
      %v597 = vpack.c.bf16 %v595, %v593
      %v598 = vpack.c.bf16 %v596, %v594
      %v599 = vld [vmem:[%s5] sm:$0xff]
      %v600 = vld [vmem:[%s5 + $0x8] sm:$0xff]
      %v601 = vld [vmem:[%s5 + $0x10] sm:$0xff]
      %v602 = vld [vmem:[%s5 + $0x18] sm:$0xff]
      %v603 = vld [vmem:[%s5 + $0x20] sm:$0xff]
      %v604 = vld [vmem:[%s5 + $0x28] sm:$0xff]
      %v605 = vld [vmem:[%s5 + $0x30] sm:$0xff]
      %v606 = vld [vmem:[%s5 + $0x38] sm:$0xff]
      %v607 = vld [vmem:[%s5 + $0x40] sm:$0xff]
      %v608 = vld [vmem:[%s5 + $0x48] sm:$0xff]
      %v609 = vld [vmem:[%s5 + $0x50] sm:$0xff]
      %v610 = vld [vmem:[%s5 + $0x58] sm:$0xff]
      %v611 = vld [vmem:[%s5 + $0x60] sm:$0xff]
      %v612 = vld [vmem:[%s5 + $0x68] sm:$0xff]
      %v613 = vld [vmem:[%s5 + $0x70] sm:$0xff]
      %v614 = vld [vmem:[%s5 + $0x78] sm:$0xff]
      %v615 = vld [vmem:[%s5 + $0x80] sm:$0xff]
      %v616 = vld [vmem:[%s5 + $0x88] sm:$0xff]
      %v617 = vld [vmem:[%s5 + $0x90] sm:$0xff]
      %v618 = vld [vmem:[%s5 + $0x98] sm:$0xff]
      %v619 = vld [vmem:[%s5 + $0xa0] sm:$0xff]
      %v620 = vld [vmem:[%s5 + $0xa8] sm:$0xff]
      %v621 = vld [vmem:[%s5 + $0xb0] sm:$0xff]
      %v622 = vld [vmem:[%s5 + $0xb8] sm:$0xff]
      %v623 = vld [vmem:[%s5 + $0xc0] sm:$0xff]
      %v624 = vld [vmem:[%s5 + $0xc8] sm:$0xff]
      %v625 = vld [vmem:[%s5 + $0xd0] sm:$0xff]
      %v626 = vld [vmem:[%s5 + $0xd8] sm:$0xff]
      %v627 = vld [vmem:[%s5 + $0xe0] sm:$0xff]
      %v628 = vld [vmem:[%s5 + $0xe8] sm:$0xff]
      %v629 = vld [vmem:[%s5 + $0xf0] sm:$0xff]
      %v630 = vld [vmem:[%s5 + $0xf8] sm:$0xff]
      %v631 = vld [vmem:[%s5 + $0x100] sm:$0xff]
      %v632 = vld [vmem:[%s5 + $0x108] sm:$0xff]
      %v633 = vld [vmem:[%s5 + $0x110] sm:$0xff]
      %v634 = vld [vmem:[%s5 + $0x118] sm:$0xff]
      %v635 = vld [vmem:[%s5 + $0x120] sm:$0xff]
      %v636 = vld [vmem:[%s5 + $0x128] sm:$0xff]
      %v637 = vld [vmem:[%s5 + $0x130] sm:$0xff]
      %v638 = vld [vmem:[%s5 + $0x138] sm:$0xff]
      %v639 = vld [vmem:[%s5 + $0x140] sm:$0xff]
      %v640 = vld [vmem:[%s5 + $0x148] sm:$0xff]
      %v641 = vld [vmem:[%s5 + $0x150] sm:$0xff]
      %v642 = vld [vmem:[%s5 + $0x158] sm:$0xff]
      %v643 = vld [vmem:[%s5 + $0x160] sm:$0xff]
      %v644 = vld [vmem:[%s5 + $0x168] sm:$0xff]
      %v645 = vld [vmem:[%s5 + $0x170] sm:$0xff]
      %v646 = vld [vmem:[%s5 + $0x178] sm:$0xff]
      %v647 = vld [vmem:[%s5 + $0x180] sm:$0xff]
      %v648 = vld [vmem:[%s5 + $0x188] sm:$0xff]
      %v649 = vld [vmem:[%s5 + $0x190] sm:$0xff]
      %v650 = vld [vmem:[%s5 + $0x198] sm:$0xff]
      %v651 = vld [vmem:[%s5 + $0x1a0] sm:$0xff]
      %v652 = vld [vmem:[%s5 + $0x1a8] sm:$0xff]
      %v653 = vld [vmem:[%s5 + $0x1b0] sm:$0xff]
      %v654 = vld [vmem:[%s5 + $0x1b8] sm:$0xff]
      %v655 = vld [vmem:[%s5 + $0x1c0] sm:$0xff]
      %v656 = vld [vmem:[%s5 + $0x1c8] sm:$0xff]
      %v657 = vld [vmem:[%s5 + $0x1d0] sm:$0xff]
      %v658 = vld [vmem:[%s5 + $0x1d8] sm:$0xff]
      %v659 = vld [vmem:[%s5 + $0x1e0] sm:$0xff]
      %v660 = vld [vmem:[%s5 + $0x1e8] sm:$0xff]
      %v661 = vld [vmem:[%s5 + $0x1f0] sm:$0xff]
      %v662 = vld [vmem:[%s5 + $0x1f8] sm:$0xff]
      %v663 = vld [vmem:[%s6] sm:$0xf]
      %v665 = vlaneseq
      %v666 = vshrl.u32 %v665, 7
      %v667 = vsub.s32 0, %v666
      %v668 = vrot.slane %v663, %v667
      %v669 = vlaneseq
      %v670 = vshrl.u32 %v669, 7
      %v671 = vsub.s32 1, %v670
      %v672 = vrot.slane %v663, %v671
      %v673 = vlaneseq
      %v674 = vshrl.u32 %v673, 7
      %v675 = vsub.s32 2, %v674
      %v676 = vrot.slane %v663, %v675
      %v677 = vlaneseq
      %v678 = vshrl.u32 %v677, 7
      %v679 = vsub.s32 3, %v678
      %v680 = vrot.slane %v663, %v679
      %v749 = vunpack.c.l.b16 %v599
      %v750 = vunpack.c.h.b16 %v599
      %v751 = vunpack.c.l.b16 %v600
      %v752 = vunpack.c.h.b16 %v600
      %v753 = vunpack.c.l.b16 %v601
      %v754 = vunpack.c.h.b16 %v601
      %v755 = vunpack.c.l.b16 %v602
      %v756 = vunpack.c.h.b16 %v602
      %v757 = vunpack.c.l.b16 %v603
      %v758 = vunpack.c.h.b16 %v603
      %v759 = vunpack.c.l.b16 %v604
      %v760 = vunpack.c.h.b16 %v604
      %v761 = vunpack.c.l.b16 %v605
      %v762 = vunpack.c.h.b16 %v605
      %v763 = vunpack.c.l.b16 %v606
      %v764 = vunpack.c.h.b16 %v606
      %v765 = vunpack.c.l.b16 %v607
      %v766 = vunpack.c.h.b16 %v607
      %v767 = vunpack.c.l.b16 %v608
      %v768 = vunpack.c.h.b16 %v608
      %v769 = vunpack.c.l.b16 %v609
      %v770 = vunpack.c.h.b16 %v609
      %v771 = vunpack.c.l.b16 %v610
      %v772 = vunpack.c.h.b16 %v610
      %v773 = vunpack.c.l.b16 %v611
      %v774 = vunpack.c.h.b16 %v611
      %v775 = vunpack.c.l.b16 %v612
      %v776 = vunpack.c.h.b16 %v612
      %v777 = vunpack.c.l.b16 %v613
      %v778 = vunpack.c.h.b16 %v613
      %v779 = vunpack.c.l.b16 %v614
      %v780 = vunpack.c.h.b16 %v614
      %v781 = vunpack.c.l.b16 %v615
      %v782 = vunpack.c.h.b16 %v615
      %v783 = vunpack.c.l.b16 %v616
      %v784 = vunpack.c.h.b16 %v616
      %v785 = vunpack.c.l.b16 %v617
      %v786 = vunpack.c.h.b16 %v617
      %v787 = vunpack.c.l.b16 %v618
      %v788 = vunpack.c.h.b16 %v618
      %v789 = vunpack.c.l.b16 %v619
      %v790 = vunpack.c.h.b16 %v619
      %v791 = vunpack.c.l.b16 %v620
      %v792 = vunpack.c.h.b16 %v620
      %v793 = vunpack.c.l.b16 %v621
      %v794 = vunpack.c.h.b16 %v621
      %v795 = vunpack.c.l.b16 %v622
      %v796 = vunpack.c.h.b16 %v622
      %v797 = vunpack.c.l.b16 %v623
      %v798 = vunpack.c.h.b16 %v623
      %v799 = vunpack.c.l.b16 %v624
      %v800 = vunpack.c.h.b16 %v624
      %v801 = vunpack.c.l.b16 %v625
      %v802 = vunpack.c.h.b16 %v625
      %v803 = vunpack.c.l.b16 %v626
      %v804 = vunpack.c.h.b16 %v626
      %v805 = vunpack.c.l.b16 %v627
      %v806 = vunpack.c.h.b16 %v627
      %v807 = vunpack.c.l.b16 %v628
      %v808 = vunpack.c.h.b16 %v628
      %v809 = vunpack.c.l.b16 %v629
      %v810 = vunpack.c.h.b16 %v629
      %v811 = vunpack.c.l.b16 %v630
      %v812 = vunpack.c.h.b16 %v630
      %v813 = vunpack.c.l.b16 %v631
      %v814 = vunpack.c.h.b16 %v631
      %v815 = vunpack.c.l.b16 %v632
      %v816 = vunpack.c.h.b16 %v632
      %v817 = vunpack.c.l.b16 %v633
      %v818 = vunpack.c.h.b16 %v633
      %v819 = vunpack.c.l.b16 %v634
      %v820 = vunpack.c.h.b16 %v634
      %v821 = vunpack.c.l.b16 %v635
      %v822 = vunpack.c.h.b16 %v635
      %v823 = vunpack.c.l.b16 %v636
      %v824 = vunpack.c.h.b16 %v636
      %v825 = vunpack.c.l.b16 %v637
      %v826 = vunpack.c.h.b16 %v637
      %v827 = vunpack.c.l.b16 %v638
      %v828 = vunpack.c.h.b16 %v638
      %v829 = vunpack.c.l.b16 %v639
      %v830 = vunpack.c.h.b16 %v639
      %v831 = vunpack.c.l.b16 %v640
      %v832 = vunpack.c.h.b16 %v640
      %v833 = vunpack.c.l.b16 %v641
      %v834 = vunpack.c.h.b16 %v641
      %v835 = vunpack.c.l.b16 %v642
      %v836 = vunpack.c.h.b16 %v642
      %v837 = vunpack.c.l.b16 %v643
      %v838 = vunpack.c.h.b16 %v643
      %v839 = vunpack.c.l.b16 %v644
      %v840 = vunpack.c.h.b16 %v644
      %v841 = vunpack.c.l.b16 %v645
      %v842 = vunpack.c.h.b16 %v645
      %v843 = vunpack.c.l.b16 %v646
      %v844 = vunpack.c.h.b16 %v646
      %v845 = vunpack.c.l.b16 %v647
      %v846 = vunpack.c.h.b16 %v647
      %v847 = vunpack.c.l.b16 %v648
      %v848 = vunpack.c.h.b16 %v648
      %v849 = vunpack.c.l.b16 %v649
      %v850 = vunpack.c.h.b16 %v649
      %v851 = vunpack.c.l.b16 %v650
      %v852 = vunpack.c.h.b16 %v650
      %v853 = vunpack.c.l.b16 %v651
      %v854 = vunpack.c.h.b16 %v651
      %v855 = vunpack.c.l.b16 %v652
      %v856 = vunpack.c.h.b16 %v652
      %v857 = vunpack.c.l.b16 %v653
      %v858 = vunpack.c.h.b16 %v653
      %v859 = vunpack.c.l.b16 %v654
      %v860 = vunpack.c.h.b16 %v654
      %v861 = vunpack.c.l.b16 %v655
      %v862 = vunpack.c.h.b16 %v655
      %v863 = vunpack.c.l.b16 %v656
      %v864 = vunpack.c.h.b16 %v656
      %v865 = vunpack.c.l.b16 %v657
      %v866 = vunpack.c.h.b16 %v657
      %v867 = vunpack.c.l.b16 %v658
      %v868 = vunpack.c.h.b16 %v658
      %v869 = vunpack.c.l.b16 %v659
      %v870 = vunpack.c.h.b16 %v659
      %v871 = vunpack.c.l.b16 %v660
      %v872 = vunpack.c.h.b16 %v660
      %v873 = vunpack.c.l.b16 %v661
      %v874 = vunpack.c.h.b16 %v661
      %v875 = vunpack.c.l.b16 %v662
      %v876 = vunpack.c.h.b16 %v662
      %v877 = vpack.c.b16 %v753, %v749
      %v878 = vpack.c.b16 %v754, %v750
      %v879 = vpack.c.b16 %v755, %v751
      %v880 = vpack.c.b16 %v756, %v752
      %v881 = vpack.c.b16 %v761, %v757
      %v882 = vpack.c.b16 %v762, %v758
      %v883 = vpack.c.b16 %v763, %v759
      %v884 = vpack.c.b16 %v764, %v760
      %v885 = vpack.c.b16 %v769, %v765
      %v886 = vpack.c.b16 %v770, %v766
      %v887 = vpack.c.b16 %v771, %v767
      %v888 = vpack.c.b16 %v772, %v768
      %v889 = vpack.c.b16 %v777, %v773
      %v890 = vpack.c.b16 %v778, %v774
      %v891 = vpack.c.b16 %v779, %v775
      %v892 = vpack.c.b16 %v780, %v776
      %v893 = vpack.c.b16 %v785, %v781
      %v894 = vpack.c.b16 %v786, %v782
      %v895 = vpack.c.b16 %v787, %v783
      %v896 = vpack.c.b16 %v788, %v784
      %v897 = vpack.c.b16 %v793, %v789
      %v898 = vpack.c.b16 %v794, %v790
      %v899 = vpack.c.b16 %v795, %v791
      %v900 = vpack.c.b16 %v796, %v792
      %v901 = vpack.c.b16 %v801, %v797
      %v902 = vpack.c.b16 %v802, %v798
      %v903 = vpack.c.b16 %v803, %v799
      %v904 = vpack.c.b16 %v804, %v800
      %v905 = vpack.c.b16 %v809, %v805
      %v906 = vpack.c.b16 %v810, %v806
      %v907 = vpack.c.b16 %v811, %v807
      %v908 = vpack.c.b16 %v812, %v808
      %v909 = vpack.c.b16 %v817, %v813
      %v910 = vpack.c.b16 %v818, %v814
      %v911 = vpack.c.b16 %v819, %v815
      %v912 = vpack.c.b16 %v820, %v816
      %v913 = vpack.c.b16 %v825, %v821
      %v914 = vpack.c.b16 %v826, %v822
      %v915 = vpack.c.b16 %v827, %v823
      %v916 = vpack.c.b16 %v828, %v824
      %v917 = vpack.c.b16 %v833, %v829
      %v918 = vpack.c.b16 %v834, %v830
      %v919 = vpack.c.b16 %v835, %v831
      %v920 = vpack.c.b16 %v836, %v832
      %v921 = vpack.c.b16 %v841, %v837
      %v922 = vpack.c.b16 %v842, %v838
      %v923 = vpack.c.b16 %v843, %v839
      %v924 = vpack.c.b16 %v844, %v840
      %v925 = vpack.c.b16 %v849, %v845
      %v926 = vpack.c.b16 %v850, %v846
      %v927 = vpack.c.b16 %v851, %v847
      %v928 = vpack.c.b16 %v852, %v848
      %v929 = vpack.c.b16 %v857, %v853
      %v930 = vpack.c.b16 %v858, %v854
      %v931 = vpack.c.b16 %v859, %v855
      %v932 = vpack.c.b16 %v860, %v856
      %v933 = vpack.c.b16 %v865, %v861
      %v934 = vpack.c.b16 %v866, %v862
      %v935 = vpack.c.b16 %v867, %v863
      %v936 = vpack.c.b16 %v868, %v864
      %v937 = vpack.c.b16 %v873, %v869
      %v938 = vpack.c.b16 %v874, %v870
      %v939 = vpack.c.b16 %v875, %v871
      %v940 = vpack.c.b16 %v876, %v872
      %1005 = vmatprep.subr.bf16.mxu0 %v878
      %1006 = vmatpush1.bf16.msra.mxu0 %v877
      %1007 = vmatprep.subr.bf16.mxu0 %v882
      %1008 = vmatpush1.bf16.msra.mxu0 %v881
      %1009 = vmatprep.subr.bf16.mxu0 %v886
      %1010 = vmatpush1.bf16.msra.mxu0 %v885
      %1011 = vmatprep.subr.bf16.mxu0 %v890
      %1012 = vmatpush1.bf16.msra.mxu0 %v889
      %1013 = vmatprep.subr.bf16.mxu0 %v894
      %1014 = vmatpush1.bf16.msra.mxu0 %v893
      %1015 = vmatprep.subr.bf16.mxu0 %v898
      %1016 = vmatpush1.bf16.msra.mxu0 %v897
      %1017 = vmatprep.subr.bf16.mxu0 %v902
      %1018 = vmatpush1.bf16.msra.mxu0 %v901
      %1019 = vmatprep.subr.bf16.mxu0 %v906
      %1020 = vmatpush1.bf16.msra.mxu0 %v905
      %1021 = vmatprep.subr.bf16.mxu0 %v910
      %1022 = vmatpush1.bf16.msra.mxu0 %v909
      %1023 = vmatprep.subr.bf16.mxu0 %v914
      %1024 = vmatpush1.bf16.msra.mxu0 %v913
      %1025 = vmatprep.subr.bf16.mxu0 %v918
      %1026 = vmatpush1.bf16.msra.mxu0 %v917
      %1027 = vmatprep.subr.bf16.mxu0 %v922
      %1028 = vmatpush1.bf16.msra.mxu0 %v921
      %1029 = vmatprep.subr.bf16.mxu0 %v926
      %1030 = vmatpush1.bf16.msra.mxu0 %v925
      %1031 = vmatprep.subr.bf16.mxu0 %v930
      %1032 = vmatpush1.bf16.msra.mxu0 %v929
      %1033 = vmatprep.subr.bf16.mxu0 %v934
      %1034 = vmatpush1.bf16.msra.mxu0 %v933
      %1035 = vmatprep.subr.bf16.mxu0 %v938
      %1036 = vmatpush1.bf16.msra.mxu0 %v937
      %1037 = vmatprep.mubr.bf16.mxu0 %v598
      %1038 = vmatmul.mubr.bf16.gmra.mrb[0].mxu0 %v597
      %v1039 = vpop.f32.mrb[0].mxu0
      %v1040 = vadd.f32 %v668, %v1039
      %v1041 = vpop.f32.mrb[0].mxu0
      %v1042 = vadd.f32 %v672, %v1041
      %v1043 = vpop.f32.mrb[0].mxu0
      %v1044 = vadd.f32 %v668, %v1043
      %v1045 = vpop.f32.mrb[0].mxu0
      %v1046 = vadd.f32 %v672, %v1045
      %1047 = vdwg.mxu0
      %1048 = vmatprep.subr.bf16.mxu0 %v880
      %1049 = vmatpush1.bf16.msra.mxu0 %v879
      %1050 = vmatprep.subr.bf16.mxu0 %v884
      %1051 = vmatpush1.bf16.msra.mxu0 %v883
      %1052 = vmatprep.subr.bf16.mxu0 %v888
      %1053 = vmatpush1.bf16.msra.mxu0 %v887
      %1054 = vmatprep.subr.bf16.mxu0 %v892
      %1055 = vmatpush1.bf16.msra.mxu0 %v891
      %1056 = vmatprep.subr.bf16.mxu0 %v896
      %1057 = vmatpush1.bf16.msra.mxu0 %v895
      %1058 = vmatprep.subr.bf16.mxu0 %v900
      %1059 = vmatpush1.bf16.msra.mxu0 %v899
      %1060 = vmatprep.subr.bf16.mxu0 %v904
      %1061 = vmatpush1.bf16.msra.mxu0 %v903
      %1062 = vmatprep.subr.bf16.mxu0 %v908
      %1063 = vmatpush1.bf16.msra.mxu0 %v907
      %1064 = vmatprep.subr.bf16.mxu0 %v912
      %1065 = vmatpush1.bf16.msra.mxu0 %v911
      %1066 = vmatprep.subr.bf16.mxu0 %v916
      %1067 = vmatpush1.bf16.msra.mxu0 %v915
      %1068 = vmatprep.subr.bf16.mxu0 %v920
      %1069 = vmatpush1.bf16.msra.mxu0 %v919
      %1070 = vmatprep.subr.bf16.mxu0 %v924
      %1071 = vmatpush1.bf16.msra.mxu0 %v923
      %1072 = vmatprep.subr.bf16.mxu0 %v928
      %1073 = vmatpush1.bf16.msra.mxu0 %v927
      %1074 = vmatprep.subr.bf16.mxu0 %v932
      %1075 = vmatpush1.bf16.msra.mxu0 %v931
      %1076 = vmatprep.subr.bf16.mxu0 %v936
      %1077 = vmatpush1.bf16.msra.mxu0 %v935
      %1078 = vmatprep.subr.bf16.mxu0 %v940
      %1079 = vmatpush1.bf16.msra.mxu0 %v939
      %1080 = vmatprep.mubr.bf16.mxu0 %v598
      %1081 = vmatmul.mubr.bf16.gmra.mrb[0].mxu0 %v597
      %v1082 = vpop.f32.mrb[0].mxu0
      %v1083 = vadd.f32 %v676, %v1082
      %v1084 = vpop.f32.mrb[0].mxu0
      %v1085 = vadd.f32 %v680, %v1084
      %v1086 = vpop.f32.mrb[0].mxu0
      %v1087 = vadd.f32 %v676, %v1086
      %v1088 = vpop.f32.mrb[0].mxu0
      %v1089 = vadd.f32 %v680, %v1088
      %1090 = vdwg.mxu0
      %v1091 = vmul.f32 %v1040, 0.2
      %v1092 = vmul.f32 %v1042, 0.2
      %v1093 = vmul.f32 %v1083, 0.2
      %v1094 = vmul.f32 %v1085, 0.2
      %v1095 = vmul.f32 %v1044, 0.2
      %v1096 = vmul.f32 %v1046, 0.2
      %v1097 = vmul.f32 %v1087, 0.2
      %v1098 = vmul.f32 %v1089, 0.2
      %v1099 = vmax.f32 %v1040, %v1091
      %v1100 = vmax.f32 %v1042, %v1092
      %v1101 = vmax.f32 %v1083, %v1093
      %v1102 = vmax.f32 %v1085, %v1094
      %v1103 = vmax.f32 %v1044, %v1095
      %v1104 = vmax.f32 %v1046, %v1096
      %v1105 = vmax.f32 %v1087, %v1097
      %v1106 = vmax.f32 %v1089, %v1098
      %1107 = vst [vmem:[#allocation4] sm:$0xff] 0.0
      %1108 = vst [vmem:[#allocation4 + $0x8] sm:$0xff] 0.0
      %1109 = vst [vmem:[#allocation4 + $0x10] sm:$0xff] 0.0
      %1110 = vst [vmem:[#allocation4 + $0x18] sm:$0xff] 0.0
      %1111 = vst [vmem:[#allocation4 + $0x20] sm:$0xff] 0.0
      %1112 = vst [vmem:[#allocation4 + $0x28] sm:$0xff] 0.0
      %1113 = vst [vmem:[#allocation4 + $0x30] sm:$0xff] 0.0
      %1114 = vst [vmem:[#allocation4 + $0x38] sm:$0xff] 0.0
      %1115 = vst [vmem:[#allocation4 + $0x40] sm:$0xff] 0.0
      %1116 = vst [vmem:[#allocation4 + $0x48] sm:$0xff] 0.0
      %1117 = vst [vmem:[#allocation4 + $0x50] sm:$0xff] 0.0
      %1118 = vst [vmem:[#allocation4 + $0x58] sm:$0xff] 0.0
      %1119 = vst [vmem:[#allocation4 + $0x60] sm:$0x1] 0.0
      %1120 = vst [vmem:[#allocation4 + $0x68] sm:$0x1] 0.0
      %1121 = vst [vmem:[#allocation4 + $0x70] sm:$0x1] 0.0
      %1122 = vst [vmem:[#allocation4 + $0x78] sm:$0x1] 0.0
      %v1127 = vrot.slane %v1099, 2
      %v1128 = vrot.slane %v1100, 2
      %v1129 = vrot.slane %v1101, 2
      %v1130 = vrot.slane %v1102, 2
      %1135 = vst [vmem:[#allocation4] sm:$0xc0] %v1127
      %1136 = vst [vmem:[#allocation4 + $0x8] sm:$0xc0] %v1128
      %1137 = vst [vmem:[#allocation4 + $0x10] sm:$0xc0] %v1129
      %1138 = vst [vmem:[#allocation4 + $0x18] sm:$0xc0] %v1130
      %1139 = vst [vmem:[#allocation4 + $0x20] sm:$0x1] %v1127
      %1140 = vst [vmem:[#allocation4 + $0x28] sm:$0x1] %v1128
      %1141 = vst [vmem:[#allocation4 + $0x30] sm:$0x1] %v1129
      %1142 = vst [vmem:[#allocation4 + $0x38] sm:$0x1] %v1130
      %1143 = vst [vmem:[#allocation4 + $0x20] sm:$0x38] %v1099
      %1144 = vst [vmem:[#allocation4 + $0x28] sm:$0x38] %v1100
      %1145 = vst [vmem:[#allocation4 + $0x30] sm:$0x38] %v1101
      %1146 = vst [vmem:[#allocation4 + $0x38] sm:$0x38] %v1102
      %vm1151 = vcmask 1041408
      %v1152 = vrot.slane %v1099, 6
      %v1153 = vrot.slane %v1103, 6
      %v1154 = vsel %vm1151, %v1152, %v1153
      %v1155 = vrot.slane %v1100, 6
      %v1156 = vrot.slane %v1104, 6
      %v1157 = vsel %vm1151, %v1155, %v1156
      %v1158 = vrot.slane %v1101, 6
      %v1159 = vrot.slane %v1105, 6
      %v1160 = vsel %vm1151, %v1158, %v1159
      %v1161 = vrot.slane %v1102, 6
      %v1162 = vrot.slane %v1106, 6
      %v1163 = vsel %vm1151, %v1161, %v1162
      %1168 = vst [vmem:[#allocation4 + $0x40] sm:$0x7] %v1154
      %1169 = vst [vmem:[#allocation4 + $0x48] sm:$0x7] %v1157
      %1170 = vst [vmem:[#allocation4 + $0x50] sm:$0x7] %v1160
      %1171 = vst [vmem:[#allocation4 + $0x58] sm:$0x7] %v1163
      %v1172 = vld [vmem:[#allocation4] sm:$0xff]
      %v1173 = vld [vmem:[#allocation4 + $0x8] sm:$0xff]
      %v1174 = vld [vmem:[#allocation4 + $0x10] sm:$0xff]
      %v1175 = vld [vmem:[#allocation4 + $0x18] sm:$0xff]
      %v1176 = vld [vmem:[#allocation4 + $0x20] sm:$0xff]
      %v1177 = vld [vmem:[#allocation4 + $0x28] sm:$0xff]
      %v1178 = vld [vmem:[#allocation4 + $0x30] sm:$0xff]
      %v1179 = vld [vmem:[#allocation4 + $0x38] sm:$0xff]
      %v1180 = vld [vmem:[#allocation4 + $0x40] sm:$0xff]
      %v1181 = vld [vmem:[#allocation4 + $0x48] sm:$0xff]
      %v1182 = vld [vmem:[#allocation4 + $0x50] sm:$0xff]
      %v1183 = vld [vmem:[#allocation4 + $0x58] sm:$0xff]
      %v1184 = vld [vmem:[#allocation4 + $0x60] sm:$0x1]
      %v1185 = vld [vmem:[#allocation4 + $0x68] sm:$0x1]
      %v1186 = vld [vmem:[#allocation4 + $0x70] sm:$0x1]
      %v1187 = vld [vmem:[#allocation4 + $0x78] sm:$0x1]
      %v1188 = vpack.c.bf16 %v1176, %v1172
      %v1189 = vpack.c.bf16 %v1177, %v1173
      %v1190 = vpack.c.bf16 %v1178, %v1174
      %v1191 = vpack.c.bf16 %v1179, %v1175
      %v1192 = vpack.c.bf16 %v1184, %v1180
      %v1193 = vpack.c.bf16 %v1185, %v1181
      %v1194 = vpack.c.bf16 %v1186, %v1182
      %v1195 = vpack.c.bf16 %v1187, %v1183
      %v1196 = vld [vmem:[%s7] sm:$0xf]
      %v1197 = vld [vmem:[%s7 + $0x4] sm:$0xf]
      %v1198 = vld [vmem:[%s7 + $0x8] sm:$0xf]
      %v1199 = vld [vmem:[%s7 + $0xc] sm:$0xf]
      %v1200 = vld [vmem:[%s7 + $0x10] sm:$0xf]
      %v1201 = vld [vmem:[%s7 + $0x14] sm:$0xf]
      %v1202 = vld [vmem:[%s7 + $0x18] sm:$0xf]
      %v1203 = vld [vmem:[%s7 + $0x1c] sm:$0xf]
      %v1204 = vld [vmem:[%s7 + $0x20] sm:$0xf]
      %v1205 = vld [vmem:[%s7 + $0x24] sm:$0xf]
      %v1206 = vld [vmem:[%s7 + $0x28] sm:$0xf]
      %v1207 = vld [vmem:[%s7 + $0x2c] sm:$0xf]
      %v1208 = vld [vmem:[%s7 + $0x30] sm:$0xf]
      %v1209 = vld [vmem:[%s7 + $0x34] sm:$0xf]
      %v1210 = vld [vmem:[%s7 + $0x38] sm:$0xf]
      %v1211 = vld [vmem:[%s7 + $0x3c] sm:$0xf]
      %v1212 = vld [vmem:[%s7 + $0x40] sm:$0xf]
      %v1213 = vld [vmem:[%s7 + $0x44] sm:$0xf]
      %v1214 = vld [vmem:[%s7 + $0x48] sm:$0xf]
      %v1215 = vld [vmem:[%s7 + $0x4c] sm:$0xf]
      %v1216 = vld [vmem:[%s7 + $0x50] sm:$0xf]
      %v1217 = vld [vmem:[%s7 + $0x54] sm:$0xf]
      %v1218 = vld [vmem:[%s7 + $0x58] sm:$0xf]
      %v1219 = vld [vmem:[%s7 + $0x5c] sm:$0xf]
      %v1220 = vld [vmem:[%s7 + $0x60] sm:$0xf]
      %v1221 = vld [vmem:[%s7 + $0x64] sm:$0xf]
      %v1222 = vld [vmem:[%s7 + $0x68] sm:$0xf]
      %v1223 = vld [vmem:[%s7 + $0x6c] sm:$0xf]
      %v1224 = vld [vmem:[%s7 + $0x70] sm:$0xf]
      %v1225 = vld [vmem:[%s7 + $0x74] sm:$0xf]
      %v1226 = vld [vmem:[%s7 + $0x78] sm:$0xf]
      %v1227 = vld [vmem:[%s7 + $0x7c] sm:$0xf]
      %v1228 = vld [vmem:[%s7 + $0x80] sm:$0xf]
      %v1229 = vld [vmem:[%s7 + $0x84] sm:$0xf]
      %v1230 = vld [vmem:[%s7 + $0x88] sm:$0xf]
      %v1231 = vld [vmem:[%s7 + $0x8c] sm:$0xf]
      %v1232 = vld [vmem:[%s7 + $0x90] sm:$0xf]
      %v1233 = vld [vmem:[%s7 + $0x94] sm:$0xf]
      %v1234 = vld [vmem:[%s7 + $0x98] sm:$0xf]
      %v1235 = vld [vmem:[%s7 + $0x9c] sm:$0xf]
      %v1236 = vld [vmem:[%s7 + $0xa0] sm:$0xf]
      %v1237 = vld [vmem:[%s7 + $0xa4] sm:$0xf]
      %v1238 = vld [vmem:[%s7 + $0xa8] sm:$0xf]
      %v1239 = vld [vmem:[%s7 + $0xac] sm:$0xf]
      %v1240 = vld [vmem:[%s7 + $0xb0] sm:$0xf]
      %v1241 = vld [vmem:[%s7 + $0xb4] sm:$0xf]
      %v1242 = vld [vmem:[%s7 + $0xb8] sm:$0xf]
      %v1243 = vld [vmem:[%s7 + $0xbc] sm:$0xf]
      %v1244 = vld [vmem:[%s7 + $0xc0] sm:$0xf]
      %v1245 = vld [vmem:[%s7 + $0xc4] sm:$0xf]
      %v1246 = vld [vmem:[%s7 + $0xc8] sm:$0xf]
      %v1247 = vld [vmem:[%s7 + $0xcc] sm:$0xf]
      %v1248 = vld [vmem:[%s7 + $0xd0] sm:$0xf]
      %v1249 = vld [vmem:[%s7 + $0xd4] sm:$0xf]
      %v1250 = vld [vmem:[%s7 + $0xd8] sm:$0xf]
      %v1251 = vld [vmem:[%s7 + $0xdc] sm:$0xf]
      %v1252 = vld [vmem:[%s7 + $0xe0] sm:$0xf]
      %v1253 = vld [vmem:[%s7 + $0xe4] sm:$0xf]
      %v1254 = vld [vmem:[%s7 + $0xe8] sm:$0xf]
      %v1255 = vld [vmem:[%s7 + $0xec] sm:$0xf]
      %v1256 = vld [vmem:[%s7 + $0xf0] sm:$0xf]
      %v1257 = vld [vmem:[%s7 + $0xf4] sm:$0xf]
      %v1258 = vld [vmem:[%s7 + $0xf8] sm:$0xf]
      %v1259 = vld [vmem:[%s7 + $0xfc] sm:$0xf]
      %v1260 = vld [vmem:[%s8] sm:$0x1]
      %v1262 = vlaneseq
      %v1263 = vshrl.u32 %v1262, 7
      %v1264 = vsub.s32 0, %v1263
      %v1265 = vrot.slane %v1260, %v1264
      %v1331 = vunpack.c.l.b16 %v1196
      %v1332 = vunpack.c.l.b16 %v1197
      %v1333 = vunpack.c.l.b16 %v1198
      %v1334 = vunpack.c.l.b16 %v1199
      %v1335 = vunpack.c.l.b16 %v1200
      %v1336 = vunpack.c.l.b16 %v1201
      %v1337 = vunpack.c.l.b16 %v1202
      %v1338 = vunpack.c.l.b16 %v1203
      %v1339 = vunpack.c.l.b16 %v1204
      %v1340 = vunpack.c.l.b16 %v1205
      %v1341 = vunpack.c.l.b16 %v1206
      %v1342 = vunpack.c.l.b16 %v1207
      %v1343 = vunpack.c.l.b16 %v1208
      %v1344 = vunpack.c.l.b16 %v1209
      %v1345 = vunpack.c.l.b16 %v1210
      %v1346 = vunpack.c.l.b16 %v1211
      %v1347 = vunpack.c.l.b16 %v1212
      %v1348 = vunpack.c.l.b16 %v1213
      %v1349 = vunpack.c.l.b16 %v1214
      %v1350 = vunpack.c.l.b16 %v1215
      %v1351 = vunpack.c.l.b16 %v1216
      %v1352 = vunpack.c.l.b16 %v1217
      %v1353 = vunpack.c.l.b16 %v1218
      %v1354 = vunpack.c.l.b16 %v1219
      %v1355 = vunpack.c.l.b16 %v1220
      %v1356 = vunpack.c.l.b16 %v1221
      %v1357 = vunpack.c.l.b16 %v1222
      %v1358 = vunpack.c.l.b16 %v1223
      %v1359 = vunpack.c.l.b16 %v1224
      %v1360 = vunpack.c.l.b16 %v1225
      %v1361 = vunpack.c.l.b16 %v1226
      %v1362 = vunpack.c.l.b16 %v1227
      %v1363 = vunpack.c.l.b16 %v1228
      %v1364 = vunpack.c.l.b16 %v1229
      %v1365 = vunpack.c.l.b16 %v1230
      %v1366 = vunpack.c.l.b16 %v1231
      %v1367 = vunpack.c.l.b16 %v1232
      %v1368 = vunpack.c.l.b16 %v1233
      %v1369 = vunpack.c.l.b16 %v1234
      %v1370 = vunpack.c.l.b16 %v1235
      %v1371 = vunpack.c.l.b16 %v1236
      %v1372 = vunpack.c.l.b16 %v1237
      %v1373 = vunpack.c.l.b16 %v1238
      %v1374 = vunpack.c.l.b16 %v1239
      %v1375 = vunpack.c.l.b16 %v1240
      %v1376 = vunpack.c.l.b16 %v1241
      %v1377 = vunpack.c.l.b16 %v1242
      %v1378 = vunpack.c.l.b16 %v1243
      %v1379 = vunpack.c.l.b16 %v1244
      %v1380 = vunpack.c.l.b16 %v1245
      %v1381 = vunpack.c.l.b16 %v1246
      %v1382 = vunpack.c.l.b16 %v1247
      %v1383 = vunpack.c.l.b16 %v1248
      %v1384 = vunpack.c.l.b16 %v1249
      %v1385 = vunpack.c.l.b16 %v1250
      %v1386 = vunpack.c.l.b16 %v1251
      %v1387 = vunpack.c.l.b16 %v1252
      %v1388 = vunpack.c.l.b16 %v1253
      %v1389 = vunpack.c.l.b16 %v1254
      %v1390 = vunpack.c.l.b16 %v1255
      %v1391 = vunpack.c.l.b16 %v1256
      %v1392 = vunpack.c.l.b16 %v1257
      %v1393 = vunpack.c.l.b16 %v1258
      %v1394 = vunpack.c.l.b16 %v1259
      %v1395 = vpack.c.b16 %v1332, %v1331
      %v1396 = vpack.c.b16 %v1334, %v1333
      %v1397 = vpack.c.b16 %v1336, %v1335
      %v1398 = vpack.c.b16 %v1338, %v1337
      %v1399 = vpack.c.b16 %v1340, %v1339
      %v1400 = vpack.c.b16 %v1342, %v1341
      %v1401 = vpack.c.b16 %v1344, %v1343
      %v1402 = vpack.c.b16 %v1346, %v1345
      %v1403 = vpack.c.b16 %v1348, %v1347
      %v1404 = vpack.c.b16 %v1350, %v1349
      %v1405 = vpack.c.b16 %v1352, %v1351
      %v1406 = vpack.c.b16 %v1354, %v1353
      %v1407 = vpack.c.b16 %v1356, %v1355
      %v1408 = vpack.c.b16 %v1358, %v1357
      %v1409 = vpack.c.b16 %v1360, %v1359
      %v1410 = vpack.c.b16 %v1362, %v1361
      %v1411 = vpack.c.b16 %v1364, %v1363
      %v1412 = vpack.c.b16 %v1366, %v1365
      %v1413 = vpack.c.b16 %v1368, %v1367
      %v1414 = vpack.c.b16 %v1370, %v1369
      %v1415 = vpack.c.b16 %v1372, %v1371
      %v1416 = vpack.c.b16 %v1374, %v1373
      %v1417 = vpack.c.b16 %v1376, %v1375
      %v1418 = vpack.c.b16 %v1378, %v1377
      %v1419 = vpack.c.b16 %v1380, %v1379
      %v1420 = vpack.c.b16 %v1382, %v1381
      %v1421 = vpack.c.b16 %v1384, %v1383
      %v1422 = vpack.c.b16 %v1386, %v1385
      %v1423 = vpack.c.b16 %v1388, %v1387
      %v1424 = vpack.c.b16 %v1390, %v1389
      %v1425 = vpack.c.b16 %v1392, %v1391
      %v1426 = vpack.c.b16 %v1394, %v1393
      %1459 = vmatprep.subr.bf16.mxu0 0
      %1460 = vmatpush1.bf16.msra.mxu0 %v1395
      %1461 = vmatprep.subr.bf16.mxu0 0
      %1462 = vmatpush1.bf16.msra.mxu0 %v1396
      %1463 = vmatprep.subr.bf16.mxu0 0
      %1464 = vmatpush1.bf16.msra.mxu0 %v1397
      %1465 = vmatprep.subr.bf16.mxu0 0
      %1466 = vmatpush1.bf16.msra.mxu0 %v1398
      %1467 = vmatprep.subr.bf16.mxu0 0
      %1468 = vmatpush1.bf16.msra.mxu0 %v1399
      %1469 = vmatprep.subr.bf16.mxu0 0
      %1470 = vmatpush1.bf16.msra.mxu0 %v1400
      %1471 = vmatprep.subr.bf16.mxu0 0
      %1472 = vmatpush1.bf16.msra.mxu0 %v1401
      %1473 = vmatprep.subr.bf16.mxu0 0
      %1474 = vmatpush1.bf16.msra.mxu0 %v1402
      %1475 = vmatprep.subr.bf16.mxu0 0
      %1476 = vmatpush1.bf16.msra.mxu0 %v1403
      %1477 = vmatprep.subr.bf16.mxu0 0
      %1478 = vmatpush1.bf16.msra.mxu0 %v1404
      %1479 = vmatprep.subr.bf16.mxu0 0
      %1480 = vmatpush1.bf16.msra.mxu0 %v1405
      %1481 = vmatprep.subr.bf16.mxu0 0
      %1482 = vmatpush1.bf16.msra.mxu0 %v1406
      %1483 = vmatprep.subr.bf16.mxu0 0
      %1484 = vmatpush1.bf16.msra.mxu0 %v1407
      %1485 = vmatprep.subr.bf16.mxu0 0
      %1486 = vmatpush1.bf16.msra.mxu0 %v1408
      %1487 = vmatprep.subr.bf16.mxu0 0
      %1488 = vmatpush1.bf16.msra.mxu0 %v1409
      %1489 = vmatprep.subr.bf16.mxu0 0
      %1490 = vmatpush1.bf16.msra.mxu0 %v1410
      %1491 = vmatprep.mubr.bf16.mxu0 %v1189
      %1492 = vmatmul.mubr.bf16.gmra.mrb[0].mxu0 %v1188
      %v1493 = vpop.f32.mrb[0].mxu0
      %v1494 = vadd.f32 %v1265, %v1493
      %v1495 = vpop.f32.mrb[0].mxu0
      %v1496 = vpop.f32.mrb[0].mxu0
      %v1497 = vadd.f32 %v1265, %v1496
      %v1498 = vpop.f32.mrb[0].mxu0
      %1499 = vmatprep.mubr.bf16.mxu0 %v1193
      %1500 = vmatmul.mubr.bf16.gmra.mrb[0].mxu0 %v1192
      %v1501 = vpop.f32.mrb[0].mxu0
      %v1502 = vadd.f32 %v1265, %v1501
      %v1503 = vpop.f32.mrb[0].mxu0
      %v1504 = vpop.f32.mrb[0].mxu0
      %v1505 = vadd.f32 %v1265, %v1504
      %v1506 = vpop.f32.mrb[0].mxu0
      %1507 = vdwg.mxu0
      %1508 = vmatprep.subr.bf16.mxu0 0
      %1509 = vmatpush1.bf16.msra.mxu0 %v1411
      %1510 = vmatprep.subr.bf16.mxu0 0
      %1511 = vmatpush1.bf16.msra.mxu0 %v1412
      %1512 = vmatprep.subr.bf16.mxu0 0
      %1513 = vmatpush1.bf16.msra.mxu0 %v1413
      %1514 = vmatprep.subr.bf16.mxu0 0
      %1515 = vmatpush1.bf16.msra.mxu0 %v1414
      %1516 = vmatprep.subr.bf16.mxu0 0
      %1517 = vmatpush1.bf16.msra.mxu0 %v1415
      %1518 = vmatprep.subr.bf16.mxu0 0
      %1519 = vmatpush1.bf16.msra.mxu0 %v1416
      %1520 = vmatprep.subr.bf16.mxu0 0
      %1521 = vmatpush1.bf16.msra.mxu0 %v1417
      %1522 = vmatprep.subr.bf16.mxu0 0
      %1523 = vmatpush1.bf16.msra.mxu0 %v1418
      %1524 = vmatprep.subr.bf16.mxu0 0
      %1525 = vmatpush1.bf16.msra.mxu0 %v1419
      %1526 = vmatprep.subr.bf16.mxu0 0
      %1527 = vmatpush1.bf16.msra.mxu0 %v1420
      %1528 = vmatprep.subr.bf16.mxu0 0
      %1529 = vmatpush1.bf16.msra.mxu0 %v1421
      %1530 = vmatprep.subr.bf16.mxu0 0
      %1531 = vmatpush1.bf16.msra.mxu0 %v1422
      %1532 = vmatprep.subr.bf16.mxu0 0
      %1533 = vmatpush1.bf16.msra.mxu0 %v1423
      %1534 = vmatprep.subr.bf16.mxu0 0
      %1535 = vmatpush1.bf16.msra.mxu0 %v1424
      %1536 = vmatprep.subr.bf16.mxu0 0
      %1537 = vmatpush1.bf16.msra.mxu0 %v1425
      %1538 = vmatprep.subr.bf16.mxu0 0
      %1539 = vmatpush1.bf16.msra.mxu0 %v1426
      %1540 = vmatprep.mubr.bf16.mxu0 %v1191
      %1541 = vmatmul.mubr.bf16.gmra.mrb[0].mxu0 %v1190
      %v1542 = vpop.f32.mrb[0].mxu0
      %v1543 = vadd.f32 %v1494, %v1542
      %v1544 = vpop.f32.mrb[0].mxu0
      %v1545 = vpop.f32.mrb[0].mxu0
      %v1546 = vadd.f32 %v1497, %v1545
      %v1547 = vpop.f32.mrb[0].mxu0
      %1548 = vmatprep.mubr.bf16.mxu0 %v1195
      %1549 = vmatmul.mubr.bf16.gmra.mrb[0].mxu0 %v1194
      %v1550 = vpop.f32.mrb[0].mxu0
      %v1551 = vadd.f32 %v1502, %v1550
      %v1552 = vpop.f32.mrb[0].mxu0
      %v1553 = vpop.f32.mrb[0].mxu0
      %v1554 = vadd.f32 %v1505, %v1553
      %v1555 = vpop.f32.mrb[0].mxu0
      %1556 = vdwg.mxu0
      %v1557 = vmul.f32 %v1543, 0.2
      %v1558 = vmul.f32 %v1546, 0.2
      %v1559 = vmul.f32 %v1551, 0.2
      %v1560 = vmul.f32 %v1554, 0.2
      %v1561 = vmax.f32 %v1543, %v1557
      %v1562 = vmax.f32 %v1546, %v1558
      %v1563 = vmax.f32 %v1551, %v1559
      %v1564 = vmax.f32 %v1554, %v1560
      %v1565 = vpack.c.bf16 %v1562, %v1561
      %v1566 = vpack.c.bf16 %v1564, %v1563
      %v1569 = vunpack.c.l.b16 %v1565
      %v1570 = vunpack.c.h.b16 %v1565
      %v1571 = vunpack.c.l.b16 %v1566
      %v1572 = vunpack.c.h.b16 %v1566
      %v1573 = vpack.c.b16 %v1569, %v1569
      %v1574 = vpack.c.b16 %v1570, %v1570
      %v1575 = vpack.c.b16 %v1571, %v1571
      %v1576 = vpack.c.b16 %v1572, %v1572
      %1581 = vst [vmem:[%s329] sm:$0xf] %v1573
      %1582 = vst [vmem:[%s329 + $0x4] sm:$0xf] %v1574
      %1583 = vst [vmem:[%s329 + $0x8] sm:$0xf] %v1575
      %vm1584 = vcmask 1040384
      %vm1585 = vsmask.f32 256
      %vm1586 = vmand %vm1584, %vm1585
      %v1587 = vld [vmem:[%s329 + $0xc] sm:$0x1]
      %v1588 = vsel %vm1586, %v1576, %v1587
      %1589 = vst [vmem:[%s329 + $0xc] sm:$0x1] %v1588
      %p1590 = scmp.lt.s32.totalorder %s20, 1
      %s1591 = scalar_select %p1590, %s20, 1
      %s1592 = smul.addr %s1591, 4
      %s1593 = smul.addr %s1592, 4
      %s1594 = scalar_lea.vmem %s9, %s1593
      // Predicated region
      $region57: #{discrimiter_net_forward.1} parent=55 // pred_check
        %p1595 = pneg %p232
      $region58: #{discrimiter_net_forward.1} parent=55 // pred_check_branch
        %1597 = sbr.rel (%p1595) target = $region60
      $region59: #{discrimiter_net_forward.1} parent=55 // pred_region
        _
      $region60: #{discrimiter_net_forward.1} parent=55 // pred_fallthru
        _
    $region56: #{discrimiter_net_forward.1} parent=5 // pred_fallthru
      _
    %p1598 = scmp.le.s32.totalorder 2, %s15
    // Predicated region
    $region61: #{discrimiter_net_forward.1} parent=5 // pred_check
      %p1599 = pneg %p1598
    $region62: #{discrimiter_net_forward.1} parent=5 // pred_check_branch
      %1601 = sbr.rel (%p1599) target = $region64
    $region63: #{discrimiter_net_forward.1} parent=5 // pred_region
      %s1602 = ssub.s32 %s15, 2
      // Predicated region
      $region65: #{discrimiter_net_forward.1} parent=63 // pred_check
        %p1603 = pneg %p238
      $region66: #{discrimiter_net_forward.1} parent=63 // pred_check_branch
        %1605 = sbr.rel (%p1603) target = $region68
      $region67: #{discrimiter_net_forward.1} parent=63 // pred_region
        %p1606 = scmp.lt.s32.totalorder %s21, 1
        %s1607 = scalar_select %p1606, %s21, 1
        %s1608 = smul.addr %s1607, 4
        %s1609 = smul.addr %s1608, 4
        %s1610 = scalar_lea.vmem %s9, %s1609
      $region68: #{discrimiter_net_forward.1} parent=63 // pred_fallthru
        _
    $region64: #{discrimiter_net_forward.1} parent=5 // pred_fallthru
      _
  $region6: #{discrimiter_net_forward.1} parent=0 // loop_footer
    %s19 = sadd.s32 1, %s15
  $region7: #{discrimiter_net_forward.1} parent=0 // loop_footer_branch
    %14 = sbr.rel target = $region3
  $region8: #{discrimiter_net_forward.1} parent=0 // loop_exit
    _

</llo_original>
